<compile_context>
chip_gen: v7x
topology: tpu7x:2x2x1
jax: 0.10.0
libtpu: 0.0.40
codegen_flags: <defaults>
</compile_context>

<pallas_src>
import functools

import numpy as np
import jax
import jax.numpy as jnp
from jax.experimental import pallas as pl
from jax.experimental.pallas import tpu as pltpu


# ----------------------------------------------------------------------------
# Fused per-scale Pallas kernel: f = relu(x@Wb+bb); n = relu(f@Wn+bn); h = n@Wh+bh
# ----------------------------------------------------------------------------
def _fused_scale_kernel(x_ref, wb_ref, bb_ref, wn_ref, bn_ref, wh_ref, bh_ref,
                        *out_refs, emit_feature):
    # backbone (patchified conv as matmul), f32 accumulation on the MXU
    x = x_ref[...]                                        # bf16 (tile_m, K)
    f = jnp.dot(x, wb_ref[...], preferred_element_type=jnp.float32)
    f = jnp.maximum(f + bb_ref[...], 0.0)                 # f32 bias + ReLU
    if emit_feature:
        out_refs[0][...] = f.astype(out_refs[0].dtype)    # bf16 feature for next scale

    # neck 1x1 conv
    n = jnp.dot(f.astype(wn_ref.dtype), wn_ref[...],
                preferred_element_type=jnp.float32)
    n = jnp.maximum(n + bn_ref[...], 0.0)

    # head 1x1 conv (linear)
    h = jnp.dot(n.astype(wh_ref.dtype), wh_ref[...],
                preferred_element_type=jnp.float32)
    out_refs[-1][...] = (h + bh_ref[...]).astype(out_refs[-1].dtype)


MAX_TILE_M = 1024  # rows per block; multiple of 8, sized for v7x's 64 MiB VMEM


def fused_scale(x2d, scale_params, *, emit_feature):
    """Run one fused scale on a flattened (M, K) activation slab."""
    wb, bb, wn, bn, wh, bh = scale_params
    M, K = x2d.shape
    Cf, Cn, Co = wb.shape[1], wn.shape[1], wh.shape[1]

    tile_m = M if M <= MAX_TILE_M else MAX_TILE_M
    Mp = pl.cdiv(M, tile_m) * tile_m
    if Mp != M:  # pad rows so the grid divides evenly; padded rows sliced off below
        x2d = jnp.pad(x2d, ((0, Mp - M), (0, 0)))
    grid = (Mp // tile_m,)

    # bf16 weights for the MXU; biases stay f32.
    wb16 = wb.astype(jnp.bfloat16)
    wn16 = wn.astype(jnp.bfloat16)
    wh16 = wh.astype(jnp.bfloat16)
    bb2 = bb.reshape(1, -1).astype(jnp.float32)
    bn2 = bn.reshape(1, -1).astype(jnp.float32)
    bh2 = bh.reshape(1, -1).astype(jnp.float32)

    out_shape = []
    out_specs = []
    if emit_feature:
        out_shape.append(jax.ShapeDtypeStruct((Mp, Cf), jnp.bfloat16))
        out_specs.append(pl.BlockSpec((tile_m, Cf), lambda i: (i, 0)))
    out_shape.append(jax.ShapeDtypeStruct((Mp, Co), jnp.float32))
    out_specs.append(pl.BlockSpec((tile_m, Co), lambda i: (i, 0)))

    flops = 2 * Mp * (K * Cf + Cf * Cn + Cn * Co)
    bytes_accessed = (
        Mp * K * 2                                   # bf16 activations in
        + (K * Cf + Cf * Cn + Cn * Co) * 2           # bf16 weights
        + (Cf + Cn + Co) * 4                         # f32 biases
        + (Mp * Cf * 2 if emit_feature else 0)       # bf16 feature out
        + Mp * Co * 4                                # f32 head out
    )

    outs = pl.pallas_call(
        functools.partial(_fused_scale_kernel, emit_feature=emit_feature),
        out_shape=tuple(out_shape),
        grid=grid,
        in_specs=[
            pl.BlockSpec((tile_m, K), lambda i: (i, 0)),
            pl.BlockSpec((K, Cf), lambda i: (0, 0)),
            pl.BlockSpec((1, Cf), lambda i: (0, 0)),
            pl.BlockSpec((Cf, Cn), lambda i: (0, 0)),
            pl.BlockSpec((1, Cn), lambda i: (0, 0)),
            pl.BlockSpec((Cn, Co), lambda i: (0, 0)),
            pl.BlockSpec((1, Co), lambda i: (0, 0)),
        ],
        out_specs=tuple(out_specs),
        compiler_params=pltpu.CompilerParams(
            dimension_semantics=("parallel",)),
        cost_estimate=pl.CostEstimate(
            flops=flops, transcendentals=0, bytes_accessed=bytes_accessed),
    )(x2d.astype(jnp.bfloat16), wb16, bb2, wn16, bn2, wh16, bh2)

    if Mp != M:
        outs = tuple(o[:M] for o in outs)
    return outs


# ----------------------------------------------------------------------------
# Wrapper-level layout helpers (pure XLA ops; tiny tensors)
# ----------------------------------------------------------------------------
def _space_to_depth(x, patch):
    """NHWC space-to-depth: (N,H,W,C) -> (N,H/p,W/p,p*p*C)."""
    N, H, W, C = x.shape
    x = x.reshape(N, H // patch, patch, W // patch, patch, C)
    x = x.transpose(0, 1, 3, 2, 4, 5)
    return x.reshape(N, H // patch, W // patch, patch * patch * C)


def _ref_scale(x2d, scale_params):
    """Pure f32 jnp reference for one fused scale (for correctness check)."""
    wb, bb, wn, bn, wh, bh = scale_params
    f = jnp.maximum(x2d @ wb + bb, 0.0)
    n = jnp.maximum(f @ wn + bn, 0.0)
    h = n @ wh + bh
    return f, h


# ----------------------------------------------------------------------------
# Deterministic parameter initialization (synthetic weights, no checkpoint)
# ----------------------------------------------------------------------------
C1, C2, C3, CNECK = 32, 64, 128, 128  # MXU-friendly channel widths


def init_params(key, input_channels=2, number_classes=2, stride=32):
    out_ch = number_classes + 4 + 1  # classes + box(4) + objectness(1)
    p1 = stride // 4

    def linear(k, fan_in, fan_out, scale=0.05):
        kw, kb = jax.random.split(k)
        return (scale * jax.random.normal(kw, (fan_in, fan_out), jnp.float32),
                scale * jax.random.normal(kb, (fan_out,), jnp.float32))

    ks = jax.random.split(key, 9)
    return {
        "scale1": (*linear(ks[0], p1 * p1 * input_channels, C1),
                   *linear(ks[1], C1, CNECK),
                   *linear(ks[2], CNECK, out_ch)),
        "scale2": (*linear(ks[3], 4 * C1, C2),
                   *linear(ks[4], C2, CNECK),
                   *linear(ks[5], CNECK, out_ch)),
        "scale3": (*linear(ks[6], 4 * C2, C3),
                   *linear(ks[7], C3, CNECK),
                   *linear(ks[8], CNECK, out_ch)),
    }


# ----------------------------------------------------------------------------
# Forward pass (NCHW in, list of NCHW per-scale maps out)
# ----------------------------------------------------------------------------
def object_detector_forward(x_nchw, params, *, stride=32, use_pallas=True):
    x = jnp.transpose(x_nchw, (0, 2, 3, 1)).astype(jnp.float32)  # NHWC
    N, H, W, C = x.shape

    # pad_to_stride (exact reference semantics: zero pad right/bottom)
    ph = (stride - H % stride) % stride
    pw = (stride - W % stride) % stride
    x = jnp.pad(x, ((0, 0), (0, ph), (0, pw), (0, 0)))

    def run_scale(feat, patch, scale_params, emit_feature):
        n_, h_, w_, c_ = feat.shape
        hs, ws = h_ // patch, w_ // patch
        x2d = _space_to_depth(feat, patch).reshape(n_ * hs * ws, patch * patch * c_)
        if use_pallas:
            outs = fused_scale(x2d, scale_params, emit_feature=emit_feature)
        else:
            f, h = _ref_scale(x2d.astype(jnp.float32), scale_params)
            outs = (f, h) if emit_feature else (h,)
        return [o.reshape(n_, hs, ws, -1) for o in outs]

    # TODO(synk): dropout(p=0.05) is declared in the reference __init__ but never
    # applied in its forward, so none is applied here.
    f1, h1 = run_scale(x, stride // 4, params["scale1"], True)    # stride 8
    f2, h2 = run_scale(f1, 2, params["scale2"], True)             # stride 16
    (h3,) = run_scale(f2, 2, params["scale3"], False)             # stride 32

    # Return per-scale maps in PyTorch NCHW convention.
    return [jnp.transpose(h, (0, 3, 1, 2)) for h in (h1, h2, h3)]


# ----------------------------------------------------------------------------
# Demo
# ----------------------------------------------------------------------------
if __name__ == "__main__":
    key = jax.random.PRNGKey(0)
    kx, kp = jax.random.split(key)

    # input_channels=2 (module default); H=W=48 is not a multiple of 32, so
    # pad_to_stride pads to 64x64 -> outputs at 8x8 / 4x4 / 2x2.
    x = jax.random.normal(kx, (2, 2, 48, 48), jnp.float32)  # NCHW
    params = init_params(kp, input_channels=2, number_classes=2, stride=32)

    fwd = jax.jit(lambda inp: object_detector_forward(inp, params))
    outs = jax.block_until_ready(fwd(x))

    expected = [(2, 7, 8, 8), (2, 7, 4, 4), (2, 7, 2, 2)]
    assert [tuple(o.shape) for o in outs] == expected, [o.shape for o in outs]
    assert all(bool(jnp.all(jnp.isfinite(o))) for o in outs)

    # Correctness vs pure-f32 jnp reference (kernel uses bf16 matmul inputs).
    ref = jax.block_until_ready(
        jax.jit(lambda inp: object_detector_forward(inp, params, use_pallas=False))(x))
    for o, r in zip(outs, ref):
        np.testing.assert_allclose(np.asarray(o), np.asarray(r), atol=2e-2, rtol=2e-2)

    print("KERNEL_OK")
</pallas_src>

<mosaic_0001>
module attributes {stable_mosaic.version = 11 : i64} {
  func.func @_fused_scale_kernel(%arg0: i32, %arg1: memref<128x128xbf16, #tpu.memory_space<vmem>>, %arg2: memref<128x32xbf16, #tpu.memory_space<vmem>>, %arg3: memref<1x32xf32, #tpu.memory_space<vmem>>, %arg4: memref<32x128xbf16, #tpu.memory_space<vmem>>, %arg5: memref<1x128xf32, #tpu.memory_space<vmem>>, %arg6: memref<128x7xbf16, #tpu.memory_space<vmem>>, %arg7: memref<1x7xf32, #tpu.memory_space<vmem>>, %arg8: memref<128x32xbf16, #tpu.memory_space<vmem>>, %arg9: memref<128x7xf32, #tpu.memory_space<vmem>>) attributes {dimension_semantics = [#tpu.dimension_semantics<parallel>], iteration_bounds = array<i64: 1>, scalar_prefetch = 0 : i64, scratch_operands = 0 : i64, tpu.core_type = #tpu.core_type<tc>, window_params = [{transform_indices = @transform_0, window_bounds = array<i64: 128, 128>}, {pipeline_mode = #tpu.pipeline_mode<synchronous>, transform_indices = @transform_1, window_bounds = array<i64: 128, 32>}, {pipeline_mode = #tpu.pipeline_mode<synchronous>, transform_indices = @transform_2, window_bounds = array<i64: 1, 32>}, {pipeline_mode = #tpu.pipeline_mode<synchronous>, transform_indices = @transform_3, window_bounds = array<i64: 32, 128>}, {pipeline_mode = #tpu.pipeline_mode<synchronous>, transform_indices = @transform_4, window_bounds = array<i64: 1, 128>}, {pipeline_mode = #tpu.pipeline_mode<synchronous>, transform_indices = @transform_5, window_bounds = array<i64: 128, 7>}, {pipeline_mode = #tpu.pipeline_mode<synchronous>, transform_indices = @transform_6, window_bounds = array<i64: 1, 7>}, {transform_indices = @transform_7, window_bounds = array<i64: 128, 32>}, {transform_indices = @transform_8, window_bounds = array<i64: 128, 7>}]} {
    %c0 = arith.constant 0 : index
    %c0_0 = arith.constant 0 : index
    %0 = vector.load %arg1[%c0, %c0_0] : memref<128x128xbf16, #tpu.memory_space<vmem>>, vector<128x128xbf16>
    %c0_1 = arith.constant 0 : index
    %c0_2 = arith.constant 0 : index
    %1 = vector.load %arg2[%c0_1, %c0_2] : memref<128x32xbf16, #tpu.memory_space<vmem>>, vector<128x32xbf16>
    %cst = arith.constant dense<0.000000e+00> : vector<128x32xf32>
    %2 = tpu.matmul %0, %1, %cst {dimension_numbers = #tpu.dot_dimension_numbers<[1], [0], [0], [1], [0, 0, 1, 1], [], []>} : vector<128x128xbf16>, vector<128x32xbf16>, vector<128x32xf32> -> vector<128x32xf32>
    %c0_3 = arith.constant 0 : index
    %c0_4 = arith.constant 0 : index
    %3 = vector.load %arg3[%c0_3, %c0_4] : memref<1x32xf32, #tpu.memory_space<vmem>>, vector<1x32xf32>
    %4 = vector.broadcast %3 : vector<1x32xf32> to vector<128x32xf32>
    %5 = arith.addf %2, %4 : vector<128x32xf32>
    %cst_5 = arith.constant 0.000000e+00 : f32
    %6 = vector.broadcast %cst_5 : f32 to vector<128x32xf32>
    %7 = arith.maximumf %5, %6 : vector<128x32xf32>
    %8 = arith.truncf %7 : vector<128x32xf32> to vector<128x32xbf16>
    %c0_6 = arith.constant 0 : index
    %c0_7 = arith.constant 0 : index
    %9 = vector.load %arg8[%c0_6, %c0_7] : memref<128x32xbf16, #tpu.memory_space<vmem>>, vector<128x32xbf16>
    tpu.vector_store %arg8[%c0_6, %c0_7], %8 {strides = array<i32>} : memref<128x32xbf16, #tpu.memory_space<vmem>>, vector<128x32xbf16>,
    %10 = arith.truncf %7 : vector<128x32xf32> to vector<128x32xbf16>
    %c0_8 = arith.constant 0 : index
    %c0_9 = arith.constant 0 : index
    %11 = vector.load %arg4[%c0_8, %c0_9] : memref<32x128xbf16, #tpu.memory_space<vmem>>, vector<32x128xbf16>
    %cst_10 = arith.constant dense<0.000000e+00> : vector<128x128xf32>
    %12 = tpu.matmul %10, %11, %cst_10 {dimension_numbers = #tpu.dot_dimension_numbers<[1], [0], [0], [1], [0, 0, 1, 1], [], []>} : vector<128x32xbf16>, vector<32x128xbf16>, vector<128x128xf32> -> vector<128x128xf32>
    %c0_11 = arith.constant 0 : index
    %c0_12 = arith.constant 0 : index
    %13 = vector.load %arg5[%c0_11, %c0_12] : memref<1x128xf32, #tpu.memory_space<vmem>>, vector<1x128xf32>
    %14 = vector.broadcast %13 : vector<1x128xf32> to vector<128x128xf32>
    %15 = arith.addf %12, %14 : vector<128x128xf32>
    %cst_13 = arith.constant 0.000000e+00 : f32
    %16 = vector.broadcast %cst_13 : f32 to vector<128x128xf32>
    %17 = arith.maximumf %15, %16 : vector<128x128xf32>
    %18 = arith.truncf %17 : vector<128x128xf32> to vector<128x128xbf16>
    %c0_14 = arith.constant 0 : index
    %c0_15 = arith.constant 0 : index
    %19 = vector.load %arg6[%c0_14, %c0_15] : memref<128x7xbf16, #tpu.memory_space<vmem>>, vector<128x7xbf16>
    %cst_16 = arith.constant dense<0.000000e+00> : vector<128x7xf32>
    %20 = tpu.matmul %18, %19, %cst_16 {dimension_numbers = #tpu.dot_dimension_numbers<[1], [0], [0], [1], [0, 0, 1, 1], [], []>} : vector<128x128xbf16>, vector<128x7xbf16>, vector<128x7xf32> -> vector<128x7xf32>
    %c0_17 = arith.constant 0 : index
    %c0_18 = arith.constant 0 : index
    %21 = vector.load %arg7[%c0_17, %c0_18] : memref<1x7xf32, #tpu.memory_space<vmem>>, vector<1x7xf32>
    %22 = vector.broadcast %21 : vector<1x7xf32> to vector<128x7xf32>
    %23 = arith.addf %20, %22 : vector<128x7xf32>
    %c0_19 = arith.constant 0 : index
    %c0_20 = arith.constant 0 : index
    %24 = vector.load %arg9[%c0_19, %c0_20] : memref<128x7xf32, #tpu.memory_space<vmem>>, vector<128x7xf32>
    tpu.vector_store %arg9[%c0_19, %c0_20], %23 {strides = array<i32>} : memref<128x7xf32, #tpu.memory_space<vmem>>, vector<128x7xf32>,
    return
  }
  func.func @transform_0(%arg0: i32) -> (i32, i32) {
    %c0_i32 = arith.constant 0 : i32
    %c0_i32_0 = arith.constant 0 : i32
    return %arg0, %c0_i32 : i32, i32
  }
  func.func @transform_1(%arg0: i32) -> (i32, i32) {
    %c0_i32 = arith.constant 0 : i32
    %c0_i32_0 = arith.constant 0 : i32
    %c0_i32_1 = arith.constant 0 : i32
    return %c0_i32, %c0_i32_0 : i32, i32
  }
  func.func @transform_2(%arg0: i32) -> (i32, i32) {
    %c0_i32 = arith.constant 0 : i32
    %c0_i32_0 = arith.constant 0 : i32
    %c0_i32_1 = arith.constant 0 : i32
    return %c0_i32, %c0_i32_0 : i32, i32
  }
  func.func @transform_3(%arg0: i32) -> (i32, i32) {
    %c0_i32 = arith.constant 0 : i32
    %c0_i32_0 = arith.constant 0 : i32
    %c0_i32_1 = arith.constant 0 : i32
    return %c0_i32, %c0_i32_0 : i32, i32
  }
  func.func @transform_4(%arg0: i32) -> (i32, i32) {
    %c0_i32 = arith.constant 0 : i32
    %c0_i32_0 = arith.constant 0 : i32
    %c0_i32_1 = arith.constant 0 : i32
    return %c0_i32, %c0_i32_0 : i32, i32
  }
  func.func @transform_5(%arg0: i32) -> (i32, i32) {
    %c0_i32 = arith.constant 0 : i32
    %c0_i32_0 = arith.constant 0 : i32
    %c0_i32_1 = arith.constant 0 : i32
    return %c0_i32, %c0_i32_0 : i32, i32
  }
  func.func @transform_6(%arg0: i32) -> (i32, i32) {
    %c0_i32 = arith.constant 0 : i32
    %c0_i32_0 = arith.constant 0 : i32
    %c0_i32_1 = arith.constant 0 : i32
    return %c0_i32, %c0_i32_0 : i32, i32
  }
  func.func @transform_7(%arg0: i32) -> (i32, i32) {
    %c0_i32 = arith.constant 0 : i32
    %c0_i32_0 = arith.constant 0 : i32
    return %arg0, %c0_i32 : i32, i32
  }
  func.func @transform_8(%arg0: i32) -> (i32, i32) {
    %c0_i32 = arith.constant 0 : i32
    %c0_i32_0 = arith.constant 0 : i32
    return %arg0, %c0_i32 : i32, i32
  }
}

module attributes {stable_mosaic.version = 11 : i64} {
  func.func @_fused_scale_kernel(%arg0: i32, %arg1: memref<32x128xbf16, #tpu.memory_space<vmem>>, %arg2: memref<128x64xbf16, #tpu.memory_space<vmem>>, %arg3: memref<1x64xf32, #tpu.memory_space<vmem>>, %arg4: memref<64x128xbf16, #tpu.memory_space<vmem>>, %arg5: memref<1x128xf32, #tpu.memory_space<vmem>>, %arg6: memref<128x7xbf16, #tpu.memory_space<vmem>>, %arg7: memref<1x7xf32, #tpu.memory_space<vmem>>, %arg8: memref<32x64xbf16, #tpu.memory_space<vmem>>, %arg9: memref<32x7xf32, #tpu.memory_space<vmem>>) attributes {dimension_semantics = [#tpu.dimension_semantics<parallel>], iteration_bounds = array<i64: 1>, scalar_prefetch = 0 : i64, scratch_operands = 0 : i64, tpu.core_type = #tpu.core_type<tc>, window_params = [{transform_indices = @transform_0, window_bounds = array<i64: 32, 128>}, {pipeline_mode = #tpu.pipeline_mode<synchronous>, transform_indices = @transform_1, window_bounds = array<i64: 128, 64>}, {pipeline_mode = #tpu.pipeline_mode<synchronous>, transform_indices = @transform_2, window_bounds = array<i64: 1, 64>}, {pipeline_mode = #tpu.pipeline_mode<synchronous>, transform_indices = @transform_3, window_bounds = array<i64: 64, 128>}, {pipeline_mode = #tpu.pipeline_mode<synchronous>, transform_indices = @transform_4, window_bounds = array<i64: 1, 128>}, {pipeline_mode = #tpu.pipeline_mode<synchronous>, transform_indices = @transform_5, window_bounds = array<i64: 128, 7>}, {pipeline_mode = #tpu.pipeline_mode<synchronous>, transform_indices = @transform_6, window_bounds = array<i64: 1, 7>}, {transform_indices = @transform_7, window_bounds = array<i64: 32, 64>}, {transform_indices = @transform_8, window_bounds = array<i64: 32, 7>}]} {
    %c0 = arith.constant 0 : index
    %c0_0 = arith.constant 0 : index
    %0 = vector.load %arg1[%c0, %c0_0] : memref<32x128xbf16, #tpu.memory_space<vmem>>, vector<32x128xbf16>
    %c0_1 = arith.constant 0 : index
    %c0_2 = arith.constant 0 : index
    %1 = vector.load %arg2[%c0_1, %c0_2] : memref<128x64xbf16, #tpu.memory_space<vmem>>, vector<128x64xbf16>
    %cst = arith.constant dense<0.000000e+00> : vector<32x64xf32>
    %2 = tpu.matmul %0, %1, %cst {dimension_numbers = #tpu.dot_dimension_numbers<[1], [0], [0], [1], [0, 0, 1, 1], [], []>} : vector<32x128xbf16>, vector<128x64xbf16>, vector<32x64xf32> -> vector<32x64xf32>
    %c0_3 = arith.constant 0 : index
    %c0_4 = arith.constant 0 : index
    %3 = vector.load %arg3[%c0_3, %c0_4] : memref<1x64xf32, #tpu.memory_space<vmem>>, vector<1x64xf32>
    %4 = vector.broadcast %3 : vector<1x64xf32> to vector<32x64xf32>
    %5 = arith.addf %2, %4 : vector<32x64xf32>
    %cst_5 = arith.constant 0.000000e+00 : f32
    %6 = vector.broadcast %cst_5 : f32 to vector<32x64xf32>
    %7 = arith.maximumf %5, %6 : vector<32x64xf32>
    %8 = arith.truncf %7 : vector<32x64xf32> to vector<32x64xbf16>
    %c0_6 = arith.constant 0 : index
    %c0_7 = arith.constant 0 : index
    %9 = vector.load %arg8[%c0_6, %c0_7] : memref<32x64xbf16, #tpu.memory_space<vmem>>, vector<32x64xbf16>
    tpu.vector_store %arg8[%c0_6, %c0_7], %8 {strides = array<i32>} : memref<32x64xbf16, #tpu.memory_space<vmem>>, vector<32x64xbf16>,
    %10 = arith.truncf %7 : vector<32x64xf32> to vector<32x64xbf16>
    %c0_8 = arith.constant 0 : index
    %c0_9 = arith.constant 0 : index
    %11 = vector.load %arg4[%c0_8, %c0_9] : memref<64x128xbf16, #tpu.memory_space<vmem>>, vector<64x128xbf16>
    %cst_10 = arith.constant dense<0.000000e+00> : vector<32x128xf32>
    %12 = tpu.matmul %10, %11, %cst_10 {dimension_numbers = #tpu.dot_dimension_numbers<[1], [0], [0], [1], [0, 0, 1, 1], [], []>} : vector<32x64xbf16>, vector<64x128xbf16>, vector<32x128xf32> -> vector<32x128xf32>
    %c0_11 = arith.constant 0 : index
    %c0_12 = arith.constant 0 : index
    %13 = vector.load %arg5[%c0_11, %c0_12] : memref<1x128xf32, #tpu.memory_space<vmem>>, vector<1x128xf32>
    %14 = vector.broadcast %13 : vector<1x128xf32> to vector<32x128xf32>
    %15 = arith.addf %12, %14 : vector<32x128xf32>
    %cst_13 = arith.constant 0.000000e+00 : f32
    %16 = vector.broadcast %cst_13 : f32 to vector<32x128xf32>
    %17 = arith.maximumf %15, %16 : vector<32x128xf32>
    %18 = arith.truncf %17 : vector<32x128xf32> to vector<32x128xbf16>
    %c0_14 = arith.constant 0 : index
    %c0_15 = arith.constant 0 : index
    %19 = vector.load %arg6[%c0_14, %c0_15] : memref<128x7xbf16, #tpu.memory_space<vmem>>, vector<128x7xbf16>
    %cst_16 = arith.constant dense<0.000000e+00> : vector<32x7xf32>
    %20 = tpu.matmul %18, %19, %cst_16 {dimension_numbers = #tpu.dot_dimension_numbers<[1], [0], [0], [1], [0, 0, 1, 1], [], []>} : vector<32x128xbf16>, vector<128x7xbf16>, vector<32x7xf32> -> vector<32x7xf32>
    %c0_17 = arith.constant 0 : index
    %c0_18 = arith.constant 0 : index
    %21 = vector.load %arg7[%c0_17, %c0_18] : memref<1x7xf32, #tpu.memory_space<vmem>>, vector<1x7xf32>
    %22 = vector.broadcast %21 : vector<1x7xf32> to vector<32x7xf32>
    %23 = arith.addf %20, %22 : vector<32x7xf32>
    %c0_19 = arith.constant 0 : index
    %c0_20 = arith.constant 0 : index
    %24 = vector.load %arg9[%c0_19, %c0_20] : memref<32x7xf32, #tpu.memory_space<vmem>>, vector<32x7xf32>
    tpu.vector_store %arg9[%c0_19, %c0_20], %23 {strides = array<i32>} : memref<32x7xf32, #tpu.memory_space<vmem>>, vector<32x7xf32>,
    return
  }
  func.func @transform_0(%arg0: i32) -> (i32, i32) {
    %c0_i32 = arith.constant 0 : i32
    %c0_i32_0 = arith.constant 0 : i32
    return %arg0, %c0_i32 : i32, i32
  }
  func.func @transform_1(%arg0: i32) -> (i32, i32) {
    %c0_i32 = arith.constant 0 : i32
    %c0_i32_0 = arith.constant 0 : i32
    %c0_i32_1 = arith.constant 0 : i32
    return %c0_i32, %c0_i32_0 : i32, i32
  }
  func.func @transform_2(%arg0: i32) -> (i32, i32) {
    %c0_i32 = arith.constant 0 : i32
    %c0_i32_0 = arith.constant 0 : i32
    %c0_i32_1 = arith.constant 0 : i32
    return %c0_i32, %c0_i32_0 : i32, i32
  }
  func.func @transform_3(%arg0: i32) -> (i32, i32) {
    %c0_i32 = arith.constant 0 : i32
    %c0_i32_0 = arith.constant 0 : i32
    %c0_i32_1 = arith.constant 0 : i32
    return %c0_i32, %c0_i32_0 : i32, i32
  }
  func.func @transform_4(%arg0: i32) -> (i32, i32) {
    %c0_i32 = arith.constant 0 : i32
    %c0_i32_0 = arith.constant 0 : i32
    %c0_i32_1 = arith.constant 0 : i32
    return %c0_i32, %c0_i32_0 : i32, i32
  }
  func.func @transform_5(%arg0: i32) -> (i32, i32) {
    %c0_i32 = arith.constant 0 : i32
    %c0_i32_0 = arith.constant 0 : i32
    %c0_i32_1 = arith.constant 0 : i32
    return %c0_i32, %c0_i32_0 : i32, i32
  }
  func.func @transform_6(%arg0: i32) -> (i32, i32) {
    %c0_i32 = arith.constant 0 : i32
    %c0_i32_0 = arith.constant 0 : i32
    %c0_i32_1 = arith.constant 0 : i32
    return %c0_i32, %c0_i32_0 : i32, i32
  }
  func.func @transform_7(%arg0: i32) -> (i32, i32) {
    %c0_i32 = arith.constant 0 : i32
    %c0_i32_0 = arith.constant 0 : i32
    return %arg0, %c0_i32 : i32, i32
  }
  func.func @transform_8(%arg0: i32) -> (i32, i32) {
    %c0_i32 = arith.constant 0 : i32
    %c0_i32_0 = arith.constant 0 : i32
    return %arg0, %c0_i32 : i32, i32
  }
}

module attributes {stable_mosaic.version = 11 : i64} {
  func.func @_fused_scale_kernel(%arg0: i32, %arg1: memref<8x256xbf16, #tpu.memory_space<vmem>>, %arg2: memref<256x128xbf16, #tpu.memory_space<vmem>>, %arg3: memref<1x128xf32, #tpu.memory_space<vmem>>, %arg4: memref<128x128xbf16, #tpu.memory_space<vmem>>, %arg5: memref<1x128xf32, #tpu.memory_space<vmem>>, %arg6: memref<128x7xbf16, #tpu.memory_space<vmem>>, %arg7: memref<1x7xf32, #tpu.memory_space<vmem>>, %arg8: memref<8x7xf32, #tpu.memory_space<vmem>>) attributes {dimension_semantics = [#tpu.dimension_semantics<parallel>], iteration_bounds = array<i64: 1>, scalar_prefetch = 0 : i64, scratch_operands = 0 : i64, tpu.core_type = #tpu.core_type<tc>, window_params = [{transform_indices = @transform_0, window_bounds = array<i64: 8, 256>}, {pipeline_mode = #tpu.pipeline_mode<synchronous>, transform_indices = @transform_1, window_bounds = array<i64: 256, 128>}, {pipeline_mode = #tpu.pipeline_mode<synchronous>, transform_indices = @transform_2, window_bounds = array<i64: 1, 128>}, {pipeline_mode = #tpu.pipeline_mode<synchronous>, transform_indices = @transform_3, window_bounds = array<i64: 128, 128>}, {pipeline_mode = #tpu.pipeline_mode<synchronous>, transform_indices = @transform_4, window_bounds = array<i64: 1, 128>}, {pipeline_mode = #tpu.pipeline_mode<synchronous>, transform_indices = @transform_5, window_bounds = array<i64: 128, 7>}, {pipeline_mode = #tpu.pipeline_mode<synchronous>, transform_indices = @transform_6, window_bounds = array<i64: 1, 7>}, {transform_indices = @transform_7, window_bounds = array<i64: 8, 7>}]} {
    %c0 = arith.constant 0 : index
    %c0_0 = arith.constant 0 : index
    %0 = vector.load %arg1[%c0, %c0_0] : memref<8x256xbf16, #tpu.memory_space<vmem>>, vector<8x256xbf16>
    %c0_1 = arith.constant 0 : index
    %c0_2 = arith.constant 0 : index
    %1 = vector.load %arg2[%c0_1, %c0_2] : memref<256x128xbf16, #tpu.memory_space<vmem>>, vector<256x128xbf16>
    %cst = arith.constant dense<0.000000e+00> : vector<8x128xf32>
    %2 = tpu.matmul %0, %1, %cst {dimension_numbers = #tpu.dot_dimension_numbers<[1], [0], [0], [1], [0, 0, 1, 1], [], []>} : vector<8x256xbf16>, vector<256x128xbf16>, vector<8x128xf32> -> vector<8x128xf32>
    %c0_3 = arith.constant 0 : index
    %c0_4 = arith.constant 0 : index
    %3 = vector.load %arg3[%c0_3, %c0_4] : memref<1x128xf32, #tpu.memory_space<vmem>>, vector<1x128xf32>
    %4 = vector.broadcast %3 : vector<1x128xf32> to vector<8x128xf32>
    %5 = arith.addf %2, %4 : vector<8x128xf32>
    %cst_5 = arith.constant 0.000000e+00 : f32
    %6 = vector.broadcast %cst_5 : f32 to vector<8x128xf32>
    %7 = arith.maximumf %5, %6 : vector<8x128xf32>
    %8 = arith.truncf %7 : vector<8x128xf32> to vector<8x128xbf16>
    %c0_6 = arith.constant 0 : index
    %c0_7 = arith.constant 0 : index
    %9 = vector.load %arg4[%c0_6, %c0_7] : memref<128x128xbf16, #tpu.memory_space<vmem>>, vector<128x128xbf16>
    %cst_8 = arith.constant dense<0.000000e+00> : vector<8x128xf32>
    %10 = tpu.matmul %8, %9, %cst_8 {dimension_numbers = #tpu.dot_dimension_numbers<[1], [0], [0], [1], [0, 0, 1, 1], [], []>} : vector<8x128xbf16>, vector<128x128xbf16>, vector<8x128xf32> -> vector<8x128xf32>
    %c0_9 = arith.constant 0 : index
    %c0_10 = arith.constant 0 : index
    %11 = vector.load %arg5[%c0_9, %c0_10] : memref<1x128xf32, #tpu.memory_space<vmem>>, vector<1x128xf32>
    %12 = vector.broadcast %11 : vector<1x128xf32> to vector<8x128xf32>
    %13 = arith.addf %10, %12 : vector<8x128xf32>
    %cst_11 = arith.constant 0.000000e+00 : f32
    %14 = vector.broadcast %cst_11 : f32 to vector<8x128xf32>
    %15 = arith.maximumf %13, %14 : vector<8x128xf32>
    %16 = arith.truncf %15 : vector<8x128xf32> to vector<8x128xbf16>
    %c0_12 = arith.constant 0 : index
    %c0_13 = arith.constant 0 : index
    %17 = vector.load %arg6[%c0_12, %c0_13] : memref<128x7xbf16, #tpu.memory_space<vmem>>, vector<128x7xbf16>
    %cst_14 = arith.constant dense<0.000000e+00> : vector<8x7xf32>
    %18 = tpu.matmul %16, %17, %cst_14 {dimension_numbers = #tpu.dot_dimension_numbers<[1], [0], [0], [1], [0, 0, 1, 1], [], []>} : vector<8x128xbf16>, vector<128x7xbf16>, vector<8x7xf32> -> vector<8x7xf32>
    %c0_15 = arith.constant 0 : index
    %c0_16 = arith.constant 0 : index
    %19 = vector.load %arg7[%c0_15, %c0_16] : memref<1x7xf32, #tpu.memory_space<vmem>>, vector<1x7xf32>
    %20 = vector.broadcast %19 : vector<1x7xf32> to vector<8x7xf32>
    %21 = arith.addf %18, %20 : vector<8x7xf32>
    %c0_17 = arith.constant 0 : index
    %c0_18 = arith.constant 0 : index
    %22 = vector.load %arg8[%c0_17, %c0_18] : memref<8x7xf32, #tpu.memory_space<vmem>>, vector<8x7xf32>
    tpu.vector_store %arg8[%c0_17, %c0_18], %21 {strides = array<i32>} : memref<8x7xf32, #tpu.memory_space<vmem>>, vector<8x7xf32>,
    return
  }
  func.func @transform_0(%arg0: i32) -> (i32, i32) {
    %c0_i32 = arith.constant 0 : i32
    %c0_i32_0 = arith.constant 0 : i32
    return %arg0, %c0_i32 : i32, i32
  }
  func.func @transform_1(%arg0: i32) -> (i32, i32) {
    %c0_i32 = arith.constant 0 : i32
    %c0_i32_0 = arith.constant 0 : i32
    %c0_i32_1 = arith.constant 0 : i32
    return %c0_i32, %c0_i32_0 : i32, i32
  }
  func.func @transform_2(%arg0: i32) -> (i32, i32) {
    %c0_i32 = arith.constant 0 : i32
    %c0_i32_0 = arith.constant 0 : i32
    %c0_i32_1 = arith.constant 0 : i32
    return %c0_i32, %c0_i32_0 : i32, i32
  }
  func.func @transform_3(%arg0: i32) -> (i32, i32) {
    %c0_i32 = arith.constant 0 : i32
    %c0_i32_0 = arith.constant 0 : i32
    %c0_i32_1 = arith.constant 0 : i32
    return %c0_i32, %c0_i32_0 : i32, i32
  }
  func.func @transform_4(%arg0: i32) -> (i32, i32) {
    %c0_i32 = arith.constant 0 : i32
    %c0_i32_0 = arith.constant 0 : i32
    %c0_i32_1 = arith.constant 0 : i32
    return %c0_i32, %c0_i32_0 : i32, i32
  }
  func.func @transform_5(%arg0: i32) -> (i32, i32) {
    %c0_i32 = arith.constant 0 : i32
    %c0_i32_0 = arith.constant 0 : i32
    %c0_i32_1 = arith.constant 0 : i32
    return %c0_i32, %c0_i32_0 : i32, i32
  }
  func.func @transform_6(%arg0: i32) -> (i32, i32) {
    %c0_i32 = arith.constant 0 : i32
    %c0_i32_0 = arith.constant 0 : i32
    %c0_i32_1 = arith.constant 0 : i32
    return %c0_i32, %c0_i32_0 : i32, i32
  }
  func.func @transform_7(%arg0: i32) -> (i32, i32) {
    %c0_i32 = arith.constant 0 : i32
    %c0_i32_0 = arith.constant 0 : i32
    return %arg0, %c0_i32 : i32, i32
  }
}

</mosaic_0001>

<llo_original>
// kernel: _lambda_.3
$region0: #{_lambda_.3}
  #allocation0 [shape = 'u32[]', space=smem, size = 0x4, offset = 0x4, fixed_abs, tag = 'smem constant byte address 0x4 - core index']
  #allocation1 [shape = 'u32[144,128]{1,0:T(1,128)}', space=vmem, size = 0x12000, scoped, tag = 'internal scratch']
  %s0 = inlined_call_operand.vmem [shape: bf16[128,128], index: 0, kind: input, shape index: {}]
  %s1 = inlined_call_operand.vmem [shape: bf16[128,32], index: 1, kind: input, shape index: {}]
  %s2 = inlined_call_operand.vmem [shape: f32[1,32], index: 2, kind: input, shape index: {}]
  %s3 = inlined_call_operand.vmem [shape: bf16[32,128], index: 3, kind: input, shape index: {}]
  %s4 = inlined_call_operand.vmem [shape: f32[1,128], index: 4, kind: input, shape index: {}]
  %s5 = inlined_call_operand.vmem [shape: bf16[128,7], index: 5, kind: input, shape index: {}]
  %s6 = inlined_call_operand.vmem [shape: f32[1,7], index: 6, kind: input, shape index: {}]
  %s7 = inlined_call_operand.vmem [shape: bf16[128,32], index: 7, kind: output, shape index: {0}]
  %s8 = inlined_call_operand.vmem [shape: f32[128,7], index: 8, kind: output, shape index: {1}]
  %9 = xla_tuple %s7, %s8
  %s10 = sld [smem:[#allocation0]]
  $region46: #{_lambda_.3} parent=0
    _
  %s12 = ssub.s32 1, %s10
  %s13 = scalar_select 0, %s12, %s10
  // Predicated region
  $region2: #{_lambda_.3} parent=0 // pred_check
    _
  $region3: #{_lambda_.3} parent=0 // pred_check_branch
    %15 = sbr.rel (0) target = $region5
  $region4: #{_lambda_.3} parent=0 // pred_region
    _
  $region5: #{_lambda_.3} parent=0 // pred_fallthru
    _
  // Predicated region
  $region6: #{_lambda_.3} parent=0 // pred_check
    _
  $region7: #{_lambda_.3} parent=0 // pred_check_branch
    %17 = sbr.rel (0) target = $region9
  $region8: #{_lambda_.3} parent=0 // pred_region
    _
  $region9: #{_lambda_.3} parent=0 // pred_fallthru
    _
  // Predicated region
  $region10: #{_lambda_.3} parent=0 // pred_check
    _
  $region11: #{_lambda_.3} parent=0 // pred_check_branch
    %19 = sbr.rel (0) target = $region13
  $region12: #{_lambda_.3} parent=0 // pred_region
    _
  $region13: #{_lambda_.3} parent=0 // pred_fallthru
    _
  // Predicated region
  $region14: #{_lambda_.3} parent=0 // pred_check
    _
  $region15: #{_lambda_.3} parent=0 // pred_check_branch
    %21 = sbr.rel (0) target = $region17
  $region16: #{_lambda_.3} parent=0 // pred_region
    _
  $region17: #{_lambda_.3} parent=0 // pred_fallthru
    _
  // Predicated region
  $region18: #{_lambda_.3} parent=0 // pred_check
    _
  $region19: #{_lambda_.3} parent=0 // pred_check_branch
    %23 = sbr.rel (0) target = $region21
  $region20: #{_lambda_.3} parent=0 // pred_region
    _
  $region21: #{_lambda_.3} parent=0 // pred_fallthru
    _
  // Predicated region
  $region22: #{_lambda_.3} parent=0 // pred_check
    _
  $region23: #{_lambda_.3} parent=0 // pred_check_branch
    %25 = sbr.rel (0) target = $region25
  $region24: #{_lambda_.3} parent=0 // pred_region
    _
  $region25: #{_lambda_.3} parent=0 // pred_fallthru
    _
  // Predicated region
  $region26: #{_lambda_.3} parent=0 // pred_check
    _
  $region27: #{_lambda_.3} parent=0 // pred_check_branch
    %27 = sbr.rel (0) target = $region29
  $region28: #{_lambda_.3} parent=0 // pred_region
    _
  $region29: #{_lambda_.3} parent=0 // pred_fallthru
    _
  %v29 = vld [vmem:[%s0] sm:$0xf]
  %v30 = vld [vmem:[%s0 + $0x4] sm:$0xf]
  %v31 = vld [vmem:[%s0 + $0x8] sm:$0xf]
  %v32 = vld [vmem:[%s0 + $0xc] sm:$0xf]
  %v33 = vld [vmem:[%s0 + $0x10] sm:$0xf]
  %v34 = vld [vmem:[%s0 + $0x14] sm:$0xf]
  %v35 = vld [vmem:[%s0 + $0x18] sm:$0xf]
  %v36 = vld [vmem:[%s0 + $0x1c] sm:$0xf]
  %v37 = vld [vmem:[%s0 + $0x20] sm:$0xf]
  %v38 = vld [vmem:[%s0 + $0x24] sm:$0xf]
  %v39 = vld [vmem:[%s0 + $0x28] sm:$0xf]
  %v40 = vld [vmem:[%s0 + $0x2c] sm:$0xf]
  %v41 = vld [vmem:[%s0 + $0x30] sm:$0xf]
  %v42 = vld [vmem:[%s0 + $0x34] sm:$0xf]
  %v43 = vld [vmem:[%s0 + $0x38] sm:$0xf]
  %v44 = vld [vmem:[%s0 + $0x3c] sm:$0xf]
  %v45 = vld [vmem:[%s1] sm:$0xf]
  %v46 = vld [vmem:[%s1 + $0x4] sm:$0xf]
  %v47 = vld [vmem:[%s1 + $0x8] sm:$0xf]
  %v48 = vld [vmem:[%s1 + $0xc] sm:$0xf]
  %v49 = vld [vmem:[%s1 + $0x10] sm:$0xf]
  %v50 = vld [vmem:[%s1 + $0x14] sm:$0xf]
  %v51 = vld [vmem:[%s1 + $0x18] sm:$0xf]
  %v52 = vld [vmem:[%s1 + $0x1c] sm:$0xf]
  %v53 = vld [vmem:[%s1 + $0x20] sm:$0xf]
  %v54 = vld [vmem:[%s1 + $0x24] sm:$0xf]
  %v55 = vld [vmem:[%s1 + $0x28] sm:$0xf]
  %v56 = vld [vmem:[%s1 + $0x2c] sm:$0xf]
  %v57 = vld [vmem:[%s1 + $0x30] sm:$0xf]
  %v58 = vld [vmem:[%s1 + $0x34] sm:$0xf]
  %v59 = vld [vmem:[%s1 + $0x38] sm:$0xf]
  %v60 = vld [vmem:[%s1 + $0x3c] sm:$0xf]
  %v61 = vld [vmem:[%s2] sm:$0x1]
  %v63 = vlaneseq
  %v64 = vshrl.u32 %v63, 7
  %v65 = vsub.s32 0, %v64
  %v66 = vrot.slane %v61, %v65
  %v84 = vunpack.c.l.b16 %v29
  %v85 = vunpack.c.l.b16 %v30
  %v86 = vunpack.c.l.b16 %v31
  %v87 = vunpack.c.l.b16 %v32
  %v88 = vunpack.c.l.b16 %v33
  %v89 = vunpack.c.l.b16 %v34
  %v90 = vunpack.c.l.b16 %v35
  %v91 = vunpack.c.l.b16 %v36
  %v92 = vunpack.c.l.b16 %v37
  %v93 = vunpack.c.l.b16 %v38
  %v94 = vunpack.c.l.b16 %v39
  %v95 = vunpack.c.l.b16 %v40
  %v96 = vunpack.c.l.b16 %v41
  %v97 = vunpack.c.l.b16 %v42
  %v98 = vunpack.c.l.b16 %v43
  %v99 = vunpack.c.l.b16 %v44
  %v100 = vpack.c.b16 %v85, %v84
  %v101 = vpack.c.b16 %v87, %v86
  %v102 = vpack.c.b16 %v89, %v88
  %v103 = vpack.c.b16 %v91, %v90
  %v104 = vpack.c.b16 %v93, %v92
  %v105 = vpack.c.b16 %v95, %v94
  %v106 = vpack.c.b16 %v97, %v96
  %v107 = vpack.c.b16 %v99, %v98
  %v132 = vunpack.c.l.b16 %v45
  %v133 = vunpack.c.l.b16 %v46
  %v134 = vunpack.c.l.b16 %v47
  %v135 = vunpack.c.l.b16 %v48
  %v136 = vunpack.c.l.b16 %v49
  %v137 = vunpack.c.l.b16 %v50
  %v138 = vunpack.c.l.b16 %v51
  %v139 = vunpack.c.l.b16 %v52
  %v140 = vunpack.c.l.b16 %v53
  %v141 = vunpack.c.l.b16 %v54
  %v142 = vunpack.c.l.b16 %v55
  %v143 = vunpack.c.l.b16 %v56
  %v144 = vunpack.c.l.b16 %v57
  %v145 = vunpack.c.l.b16 %v58
  %v146 = vunpack.c.l.b16 %v59
  %v147 = vunpack.c.l.b16 %v60
  %v148 = vpack.c.b16 %v133, %v132
  %v149 = vpack.c.b16 %v135, %v134
  %v150 = vpack.c.b16 %v137, %v136
  %v151 = vpack.c.b16 %v139, %v138
  %v152 = vpack.c.b16 %v141, %v140
  %v153 = vpack.c.b16 %v143, %v142
  %v154 = vpack.c.b16 %v145, %v144
  %v155 = vpack.c.b16 %v147, %v146
  %164 = vmatprep.subr.bf16.mxu0 0
  %165 = vmatpush1.bf16.msra.mxu0 %v148
  %166 = vmatprep.subr.bf16.mxu0 0
  %167 = vmatpush1.bf16.msra.mxu0 %v149
  %168 = vmatprep.subr.bf16.mxu0 0
  %169 = vmatpush1.bf16.msra.mxu0 %v150
  %170 = vmatprep.subr.bf16.mxu0 0
  %171 = vmatpush1.bf16.msra.mxu0 %v151
  %172 = vmatprep.subr.bf16.mxu0 0
  %173 = vmatpush1.bf16.msra.mxu0 %v152
  %174 = vmatprep.subr.bf16.mxu0 0
  %175 = vmatpush1.bf16.msra.mxu0 %v153
  %176 = vmatprep.subr.bf16.mxu0 0
  %177 = vmatpush1.bf16.msra.mxu0 %v154
  %178 = vmatprep.subr.bf16.mxu0 0
  %179 = vmatpush1.bf16.msra.mxu0 %v155
  %180 = vmatprep.subr.bf16.mxu0 0
  %181 = vmatpush1.bf16.msra.mxu0 0
  %182 = vmatprep.subr.bf16.mxu0 0
  %183 = vmatpush1.bf16.msra.mxu0 0
  %184 = vmatprep.subr.bf16.mxu0 0
  %185 = vmatpush1.bf16.msra.mxu0 0
  %186 = vmatprep.subr.bf16.mxu0 0
  %187 = vmatpush1.bf16.msra.mxu0 0
  %188 = vmatprep.subr.bf16.mxu0 0
  %189 = vmatpush1.bf16.msra.mxu0 0
  %190 = vmatprep.subr.bf16.mxu0 0
  %191 = vmatpush1.bf16.msra.mxu0 0
  %192 = vmatprep.subr.bf16.mxu0 0
  %193 = vmatpush1.bf16.msra.mxu0 0
  %194 = vmatprep.subr.bf16.mxu0 0
  %195 = vmatpush1.bf16.msra.mxu0 0
  %196 = vmatprep.mubr.bf16.mxu0 0
  %197 = vmatmul.mubr.bf16.gmra.mrb[0].mxu0 %v100
  %v198 = vpop.f32.mrb[0].mxu0
  %v199 = vadd.f32 %v66, %v198
  %v200 = vpop.f32.mrb[0].mxu0
  %v201 = vpop.f32.mrb[0].mxu0
  %v202 = vadd.f32 %v66, %v201
  %v203 = vpop.f32.mrb[0].mxu0
  %204 = vmatprep.mubr.bf16.mxu0 0
  %205 = vmatmul.mubr.bf16.gmra.mrb[0].mxu0 %v101
  %v206 = vpop.f32.mrb[0].mxu0
  %v207 = vadd.f32 %v66, %v206
  %v208 = vpop.f32.mrb[0].mxu0
  %v209 = vpop.f32.mrb[0].mxu0
  %v210 = vadd.f32 %v66, %v209
  %v211 = vpop.f32.mrb[0].mxu0
  %212 = vmatprep.mubr.bf16.mxu0 0
  %213 = vmatmul.mubr.bf16.gmra.mrb[0].mxu0 %v102
  %v214 = vpop.f32.mrb[0].mxu0
  %v215 = vadd.f32 %v66, %v214
  %v216 = vpop.f32.mrb[0].mxu0
  %v217 = vpop.f32.mrb[0].mxu0
  %v218 = vadd.f32 %v66, %v217
  %v219 = vpop.f32.mrb[0].mxu0
  %220 = vmatprep.mubr.bf16.mxu0 0
  %221 = vmatmul.mubr.bf16.gmra.mrb[0].mxu0 %v103
  %v222 = vpop.f32.mrb[0].mxu0
  %v223 = vadd.f32 %v66, %v222
  %v224 = vpop.f32.mrb[0].mxu0
  %v225 = vpop.f32.mrb[0].mxu0
  %v226 = vadd.f32 %v66, %v225
  %v227 = vpop.f32.mrb[0].mxu0
  %228 = vmatprep.mubr.bf16.mxu0 0
  %229 = vmatmul.mubr.bf16.gmra.mrb[0].mxu0 %v104
  %v230 = vpop.f32.mrb[0].mxu0
  %v231 = vadd.f32 %v66, %v230
  %v232 = vpop.f32.mrb[0].mxu0
  %v233 = vpop.f32.mrb[0].mxu0
  %v234 = vadd.f32 %v66, %v233
  %v235 = vpop.f32.mrb[0].mxu0
  %236 = vmatprep.mubr.bf16.mxu0 0
  %237 = vmatmul.mubr.bf16.gmra.mrb[0].mxu0 %v105
  %v238 = vpop.f32.mrb[0].mxu0
  %v239 = vadd.f32 %v66, %v238
  %v240 = vpop.f32.mrb[0].mxu0
  %v241 = vpop.f32.mrb[0].mxu0
  %v242 = vadd.f32 %v66, %v241
  %v243 = vpop.f32.mrb[0].mxu0
  %244 = vmatprep.mubr.bf16.mxu0 0
  %245 = vmatmul.mubr.bf16.gmra.mrb[0].mxu0 %v106
  %v246 = vpop.f32.mrb[0].mxu0
  %v247 = vadd.f32 %v66, %v246
  %v248 = vpop.f32.mrb[0].mxu0
  %v249 = vpop.f32.mrb[0].mxu0
  %v250 = vadd.f32 %v66, %v249
  %v251 = vpop.f32.mrb[0].mxu0
  %252 = vmatprep.mubr.bf16.mxu0 0
  %253 = vmatmul.mubr.bf16.gmra.mrb[0].mxu0 %v107
  %v254 = vpop.f32.mrb[0].mxu0
  %v255 = vadd.f32 %v66, %v254
  %v256 = vpop.f32.mrb[0].mxu0
  %v257 = vpop.f32.mrb[0].mxu0
  %v258 = vadd.f32 %v66, %v257
  %v259 = vpop.f32.mrb[0].mxu0
  %260 = vdwg.mxu0
  %v261 = vmax.f32 %v199, 0.0
  %v262 = vmax.f32 %v202, 0.0
  %v263 = vmax.f32 %v207, 0.0
  %v264 = vmax.f32 %v210, 0.0
  %v265 = vmax.f32 %v215, 0.0
  %v266 = vmax.f32 %v218, 0.0
  %v267 = vmax.f32 %v223, 0.0
  %v268 = vmax.f32 %v226, 0.0
  %v269 = vmax.f32 %v231, 0.0
  %v270 = vmax.f32 %v234, 0.0
  %v271 = vmax.f32 %v239, 0.0
  %v272 = vmax.f32 %v242, 0.0
  %v273 = vmax.f32 %v247, 0.0
  %v274 = vmax.f32 %v250, 0.0
  %v275 = vmax.f32 %v255, 0.0
  %v276 = vmax.f32 %v258, 0.0
  %v277 = vpack.c.bf16 %v262, %v261
  %v278 = vpack.c.bf16 %v264, %v263
  %v279 = vpack.c.bf16 %v266, %v265
  %v280 = vpack.c.bf16 %v268, %v267
  %v281 = vpack.c.bf16 %v270, %v269
  %v282 = vpack.c.bf16 %v272, %v271
  %v283 = vpack.c.bf16 %v274, %v273
  %v284 = vpack.c.bf16 %v276, %v275
  %v293 = vunpack.c.l.b16 %v277
  %v294 = vunpack.c.h.b16 %v277
  %v295 = vunpack.c.l.b16 %v278
  %v296 = vunpack.c.h.b16 %v278
  %v297 = vunpack.c.l.b16 %v279
  %v298 = vunpack.c.h.b16 %v279
  %v299 = vunpack.c.l.b16 %v280
  %v300 = vunpack.c.h.b16 %v280
  %v301 = vunpack.c.l.b16 %v281
  %v302 = vunpack.c.h.b16 %v281
  %v303 = vunpack.c.l.b16 %v282
  %v304 = vunpack.c.h.b16 %v282
  %v305 = vunpack.c.l.b16 %v283
  %v306 = vunpack.c.h.b16 %v283
  %v307 = vunpack.c.l.b16 %v284
  %v308 = vunpack.c.h.b16 %v284
  %v309 = vpack.c.b16 %v293, %v293
  %v310 = vpack.c.b16 %v294, %v294
  %v311 = vpack.c.b16 %v295, %v295
  %v312 = vpack.c.b16 %v296, %v296
  %v313 = vpack.c.b16 %v297, %v297
  %v314 = vpack.c.b16 %v298, %v298
  %v315 = vpack.c.b16 %v299, %v299
  %v316 = vpack.c.b16 %v300, %v300
  %v317 = vpack.c.b16 %v301, %v301
  %v318 = vpack.c.b16 %v302, %v302
  %v319 = vpack.c.b16 %v303, %v303
  %v320 = vpack.c.b16 %v304, %v304
  %v321 = vpack.c.b16 %v305, %v305
  %v322 = vpack.c.b16 %v306, %v306
  %v323 = vpack.c.b16 %v307, %v307
  %v324 = vpack.c.b16 %v308, %v308
  %vm341 = vcmask 257024
  %342 = vst.msk [vmem:[%s7] sm:$0xf] %vm341, %v309
  %343 = vst.msk [vmem:[%s7 + $0x4] sm:$0xf] %vm341, %v310
  %344 = vst.msk [vmem:[%s7 + $0x8] sm:$0xf] %vm341, %v311
  %345 = vst.msk [vmem:[%s7 + $0xc] sm:$0xf] %vm341, %v312
  %346 = vst.msk [vmem:[%s7 + $0x10] sm:$0xf] %vm341, %v313
  %347 = vst.msk [vmem:[%s7 + $0x14] sm:$0xf] %vm341, %v314
  %348 = vst.msk [vmem:[%s7 + $0x18] sm:$0xf] %vm341, %v315
  %349 = vst.msk [vmem:[%s7 + $0x1c] sm:$0xf] %vm341, %v316
  %350 = vst.msk [vmem:[%s7 + $0x20] sm:$0xf] %vm341, %v317
  %351 = vst.msk [vmem:[%s7 + $0x24] sm:$0xf] %vm341, %v318
  %352 = vst.msk [vmem:[%s7 + $0x28] sm:$0xf] %vm341, %v319
  %353 = vst.msk [vmem:[%s7 + $0x2c] sm:$0xf] %vm341, %v320
  %354 = vst.msk [vmem:[%s7 + $0x30] sm:$0xf] %vm341, %v321
  %355 = vst.msk [vmem:[%s7 + $0x34] sm:$0xf] %vm341, %v322
  %356 = vst.msk [vmem:[%s7 + $0x38] sm:$0xf] %vm341, %v323
  %357 = vst.msk [vmem:[%s7 + $0x3c] sm:$0xf] %vm341, %v324
  %v358 = vld [vmem:[%s3] sm:$0xf]
  %v359 = vld [vmem:[%s3 + $0x4] sm:$0xf]
  %v360 = vld [vmem:[%s3 + $0x8] sm:$0xf]
  %v361 = vld [vmem:[%s3 + $0xc] sm:$0xf]
  %v362 = vld [vmem:[%s4] sm:$0x1]
  %v364 = vlaneseq
  %v365 = vshrl.u32 %v364, 7
  %v366 = vsub.s32 0, %v365
  %v367 = vrot.slane %v362, %v366
  %v373 = vunpack.c.l.b16 %v358
  %v374 = vunpack.c.l.b16 %v359
  %v375 = vunpack.c.l.b16 %v360
  %v376 = vunpack.c.l.b16 %v361
  %v377 = vpack.c.b16 %v374, %v373
  %v378 = vpack.c.b16 %v376, %v375
  %vm381 = vcmask 261120
  %v383 = vsel %vm381, %v277, 0
  %v386 = vsel %vm381, %v278, 0
  %v389 = vsel %vm381, %v279, 0
  %v392 = vsel %vm381, %v280, 0
  %v395 = vsel %vm381, %v281, 0
  %v398 = vsel %vm381, %v282, 0
  %v401 = vsel %vm381, %v283, 0
  %v404 = vsel %vm381, %v284, 0
  %406 = vmatprep.subr.bf16.mxu0 0
  %407 = vmatpush1.bf16.msra.mxu0 %v377
  %408 = vmatprep.subr.bf16.mxu0 0
  %409 = vmatpush1.bf16.msra.mxu0 %v378
  %410 = vmatprep.subr.bf16.mxu0 0
  %411 = vmatpush1.bf16.msra.mxu0 0
  %412 = vmatprep.subr.bf16.mxu0 0
  %413 = vmatpush1.bf16.msra.mxu0 0
  %414 = vmatprep.subr.bf16.mxu0 0
  %415 = vmatpush1.bf16.msra.mxu0 0
  %416 = vmatprep.subr.bf16.mxu0 0
  %417 = vmatpush1.bf16.msra.mxu0 0
  %418 = vmatprep.subr.bf16.mxu0 0
  %419 = vmatpush1.bf16.msra.mxu0 0
  %420 = vmatprep.subr.bf16.mxu0 0
  %421 = vmatpush1.bf16.msra.mxu0 0
  %422 = vmatprep.subr.bf16.mxu0 0
  %423 = vmatpush1.bf16.msra.mxu0 0
  %424 = vmatprep.subr.bf16.mxu0 0
  %425 = vmatpush1.bf16.msra.mxu0 0
  %426 = vmatprep.subr.bf16.mxu0 0
  %427 = vmatpush1.bf16.msra.mxu0 0
  %428 = vmatprep.subr.bf16.mxu0 0
  %429 = vmatpush1.bf16.msra.mxu0 0
  %430 = vmatprep.subr.bf16.mxu0 0
  %431 = vmatpush1.bf16.msra.mxu0 0
  %432 = vmatprep.subr.bf16.mxu0 0
  %433 = vmatpush1.bf16.msra.mxu0 0
  %434 = vmatprep.subr.bf16.mxu0 0
  %435 = vmatpush1.bf16.msra.mxu0 0
  %436 = vmatprep.subr.bf16.mxu0 0
  %437 = vmatpush1.bf16.msra.mxu0 0
  %438 = vmatprep.mubr.bf16.mxu0 0
  %439 = vmatmul.mubr.bf16.gmra.mrb[0].mxu0 %v383
  %v440 = vpop.f32.mrb[0].mxu0
  %v441 = vadd.f32 %v367, %v440
  %v442 = vpop.f32.mrb[0].mxu0
  %v443 = vpop.f32.mrb[0].mxu0
  %v444 = vadd.f32 %v367, %v443
  %v445 = vpop.f32.mrb[0].mxu0
  %446 = vmatprep.mubr.bf16.mxu0 0
  %447 = vmatmul.mubr.bf16.gmra.mrb[0].mxu0 %v386
  %v448 = vpop.f32.mrb[0].mxu0
  %v449 = vadd.f32 %v367, %v448
  %v450 = vpop.f32.mrb[0].mxu0
  %v451 = vpop.f32.mrb[0].mxu0
  %v452 = vadd.f32 %v367, %v451
  %v453 = vpop.f32.mrb[0].mxu0
  %454 = vmatprep.mubr.bf16.mxu0 0
  %455 = vmatmul.mubr.bf16.gmra.mrb[0].mxu0 %v389
  %v456 = vpop.f32.mrb[0].mxu0
  %v457 = vadd.f32 %v367, %v456
  %v458 = vpop.f32.mrb[0].mxu0
  %v459 = vpop.f32.mrb[0].mxu0
  %v460 = vadd.f32 %v367, %v459
  %v461 = vpop.f32.mrb[0].mxu0
  %462 = vmatprep.mubr.bf16.mxu0 0
  %463 = vmatmul.mubr.bf16.gmra.mrb[0].mxu0 %v392
  %v464 = vpop.f32.mrb[0].mxu0
  %v465 = vadd.f32 %v367, %v464
  %v466 = vpop.f32.mrb[0].mxu0
  %v467 = vpop.f32.mrb[0].mxu0
  %v468 = vadd.f32 %v367, %v467
  %v469 = vpop.f32.mrb[0].mxu0
  %470 = vmatprep.mubr.bf16.mxu0 0
  %471 = vmatmul.mubr.bf16.gmra.mrb[0].mxu0 %v395
  %v472 = vpop.f32.mrb[0].mxu0
  %v473 = vadd.f32 %v367, %v472
  %v474 = vpop.f32.mrb[0].mxu0
  %v475 = vpop.f32.mrb[0].mxu0
  %v476 = vadd.f32 %v367, %v475
  %v477 = vpop.f32.mrb[0].mxu0
  %478 = vmatprep.mubr.bf16.mxu0 0
  %479 = vmatmul.mubr.bf16.gmra.mrb[0].mxu0 %v398
  %v480 = vpop.f32.mrb[0].mxu0
  %v481 = vadd.f32 %v367, %v480
  %v482 = vpop.f32.mrb[0].mxu0
  %v483 = vpop.f32.mrb[0].mxu0
  %v484 = vadd.f32 %v367, %v483
  %v485 = vpop.f32.mrb[0].mxu0
  %486 = vmatprep.mubr.bf16.mxu0 0
  %487 = vmatmul.mubr.bf16.gmra.mrb[0].mxu0 %v401
  %v488 = vpop.f32.mrb[0].mxu0
  %v489 = vadd.f32 %v367, %v488
  %v490 = vpop.f32.mrb[0].mxu0
  %v491 = vpop.f32.mrb[0].mxu0
  %v492 = vadd.f32 %v367, %v491
  %v493 = vpop.f32.mrb[0].mxu0
  %494 = vmatprep.mubr.bf16.mxu0 0
  %495 = vmatmul.mubr.bf16.gmra.mrb[0].mxu0 %v404
  %v496 = vpop.f32.mrb[0].mxu0
  %v497 = vadd.f32 %v367, %v496
  %v498 = vpop.f32.mrb[0].mxu0
  %v499 = vpop.f32.mrb[0].mxu0
  %v500 = vadd.f32 %v367, %v499
  %v501 = vpop.f32.mrb[0].mxu0
  %502 = vdwg.mxu0
  %v503 = vmax.f32 %v441, 0.0
  %v504 = vmax.f32 %v444, 0.0
  %v505 = vmax.f32 %v449, 0.0
  %v506 = vmax.f32 %v452, 0.0
  %v507 = vmax.f32 %v457, 0.0
  %v508 = vmax.f32 %v460, 0.0
  %v509 = vmax.f32 %v465, 0.0
  %v510 = vmax.f32 %v468, 0.0
  %v511 = vmax.f32 %v473, 0.0
  %v512 = vmax.f32 %v476, 0.0
  %v513 = vmax.f32 %v481, 0.0
  %v514 = vmax.f32 %v484, 0.0
  %v515 = vmax.f32 %v489, 0.0
  %v516 = vmax.f32 %v492, 0.0
  %v517 = vmax.f32 %v497, 0.0
  %v518 = vmax.f32 %v500, 0.0
  %v519 = vpack.c.bf16 %v504, %v503
  %v520 = vpack.c.bf16 %v506, %v505
  %v521 = vpack.c.bf16 %v508, %v507
  %v522 = vpack.c.bf16 %v510, %v509
  %v523 = vpack.c.bf16 %v512, %v511
  %v524 = vpack.c.bf16 %v514, %v513
  %v525 = vpack.c.bf16 %v516, %v515
  %v526 = vpack.c.bf16 %v518, %v517
  %v527 = vld [vmem:[%s5] sm:$0xf]
  %v528 = vld [vmem:[%s5 + $0x4] sm:$0xf]
  %v529 = vld [vmem:[%s5 + $0x8] sm:$0xf]
  %v530 = vld [vmem:[%s5 + $0xc] sm:$0xf]
  %v531 = vld [vmem:[%s5 + $0x10] sm:$0xf]
  %v532 = vld [vmem:[%s5 + $0x14] sm:$0xf]
  %v533 = vld [vmem:[%s5 + $0x18] sm:$0xf]
  %v534 = vld [vmem:[%s5 + $0x1c] sm:$0xf]
  %v535 = vld [vmem:[%s5 + $0x20] sm:$0xf]
  %v536 = vld [vmem:[%s5 + $0x24] sm:$0xf]
  %v537 = vld [vmem:[%s5 + $0x28] sm:$0xf]
  %v538 = vld [vmem:[%s5 + $0x2c] sm:$0xf]
  %v539 = vld [vmem:[%s5 + $0x30] sm:$0xf]
  %v540 = vld [vmem:[%s5 + $0x34] sm:$0xf]
  %v541 = vld [vmem:[%s5 + $0x38] sm:$0xf]
  %v542 = vld [vmem:[%s5 + $0x3c] sm:$0xf]
  %v543 = vld [vmem:[%s6] sm:$0x1]
  %v545 = vlaneseq
  %v546 = vshrl.u32 %v545, 7
  %v547 = vsub.s32 0, %v546
  %v548 = vrot.slane %v543, %v547
  %v566 = vunpack.c.l.b16 %v527
  %v567 = vunpack.c.l.b16 %v528
  %v568 = vunpack.c.l.b16 %v529
  %v569 = vunpack.c.l.b16 %v530
  %v570 = vunpack.c.l.b16 %v531
  %v571 = vunpack.c.l.b16 %v532
  %v572 = vunpack.c.l.b16 %v533
  %v573 = vunpack.c.l.b16 %v534
  %v574 = vunpack.c.l.b16 %v535
  %v575 = vunpack.c.l.b16 %v536
  %v576 = vunpack.c.l.b16 %v537
  %v577 = vunpack.c.l.b16 %v538
  %v578 = vunpack.c.l.b16 %v539
  %v579 = vunpack.c.l.b16 %v540
  %v580 = vunpack.c.l.b16 %v541
  %v581 = vunpack.c.l.b16 %v542
  %v582 = vpack.c.b16 %v567, %v566
  %v583 = vpack.c.b16 %v569, %v568
  %v584 = vpack.c.b16 %v571, %v570
  %v585 = vpack.c.b16 %v573, %v572
  %v586 = vpack.c.b16 %v575, %v574
  %v587 = vpack.c.b16 %v577, %v576
  %v588 = vpack.c.b16 %v579, %v578
  %v589 = vpack.c.b16 %v581, %v580
  %598 = vmatprep.subr.bf16.mxu0 0
  %599 = vmatpush1.bf16.msra.mxu0 %v582
  %600 = vmatprep.subr.bf16.mxu0 0
  %601 = vmatpush1.bf16.msra.mxu0 %v583
  %602 = vmatprep.subr.bf16.mxu0 0
  %603 = vmatpush1.bf16.msra.mxu0 %v584
  %604 = vmatprep.subr.bf16.mxu0 0
  %605 = vmatpush1.bf16.msra.mxu0 %v585
  %606 = vmatprep.subr.bf16.mxu0 0
  %607 = vmatpush1.bf16.msra.mxu0 %v586
  %608 = vmatprep.subr.bf16.mxu0 0
  %609 = vmatpush1.bf16.msra.mxu0 %v587
  %610 = vmatprep.subr.bf16.mxu0 0
  %611 = vmatpush1.bf16.msra.mxu0 %v588
  %612 = vmatprep.subr.bf16.mxu0 0
  %613 = vmatpush1.bf16.msra.mxu0 %v589
  %614 = vmatprep.subr.bf16.mxu0 0
  %615 = vmatpush1.bf16.msra.mxu0 0
  %616 = vmatprep.subr.bf16.mxu0 0
  %617 = vmatpush1.bf16.msra.mxu0 0
  %618 = vmatprep.subr.bf16.mxu0 0
  %619 = vmatpush1.bf16.msra.mxu0 0
  %620 = vmatprep.subr.bf16.mxu0 0
  %621 = vmatpush1.bf16.msra.mxu0 0
  %622 = vmatprep.subr.bf16.mxu0 0
  %623 = vmatpush1.bf16.msra.mxu0 0
  %624 = vmatprep.subr.bf16.mxu0 0
  %625 = vmatpush1.bf16.msra.mxu0 0
  %626 = vmatprep.subr.bf16.mxu0 0
  %627 = vmatpush1.bf16.msra.mxu0 0
  %628 = vmatprep.subr.bf16.mxu0 0
  %629 = vmatpush1.bf16.msra.mxu0 0
  %630 = vmatprep.mubr.bf16.mxu0 0
  %631 = vmatmul.mubr.bf16.gmra.mrb[0].mxu0 %v519
  %v632 = vpop.f32.mrb[0].mxu0
  %v633 = vadd.f32 %v548, %v632
  %v634 = vpop.f32.mrb[0].mxu0
  %v635 = vpop.f32.mrb[0].mxu0
  %v636 = vadd.f32 %v548, %v635
  %v637 = vpop.f32.mrb[0].mxu0
  %638 = vmatprep.mubr.bf16.mxu0 0
  %639 = vmatmul.mubr.bf16.gmra.mrb[0].mxu0 %v520
  %v640 = vpop.f32.mrb[0].mxu0
  %v641 = vadd.f32 %v548, %v640
  %v642 = vpop.f32.mrb[0].mxu0
  %v643 = vpop.f32.mrb[0].mxu0
  %v644 = vadd.f32 %v548, %v643
  %v645 = vpop.f32.mrb[0].mxu0
  %646 = vmatprep.mubr.bf16.mxu0 0
  %647 = vmatmul.mubr.bf16.gmra.mrb[0].mxu0 %v521
  %v648 = vpop.f32.mrb[0].mxu0
  %v649 = vadd.f32 %v548, %v648
  %v650 = vpop.f32.mrb[0].mxu0
  %v651 = vpop.f32.mrb[0].mxu0
  %v652 = vadd.f32 %v548, %v651
  %v653 = vpop.f32.mrb[0].mxu0
  %654 = vmatprep.mubr.bf16.mxu0 0
  %655 = vmatmul.mubr.bf16.gmra.mrb[0].mxu0 %v522
  %v656 = vpop.f32.mrb[0].mxu0
  %v657 = vadd.f32 %v548, %v656
  %v658 = vpop.f32.mrb[0].mxu0
  %v659 = vpop.f32.mrb[0].mxu0
  %v660 = vadd.f32 %v548, %v659
  %v661 = vpop.f32.mrb[0].mxu0
  %662 = vmatprep.mubr.bf16.mxu0 0
  %663 = vmatmul.mubr.bf16.gmra.mrb[0].mxu0 %v523
  %v664 = vpop.f32.mrb[0].mxu0
  %v665 = vadd.f32 %v548, %v664
  %v666 = vpop.f32.mrb[0].mxu0
  %v667 = vpop.f32.mrb[0].mxu0
  %v668 = vadd.f32 %v548, %v667
  %v669 = vpop.f32.mrb[0].mxu0
  %670 = vmatprep.mubr.bf16.mxu0 0
  %671 = vmatmul.mubr.bf16.gmra.mrb[0].mxu0 %v524
  %v672 = vpop.f32.mrb[0].mxu0
  %v673 = vadd.f32 %v548, %v672
  %v674 = vpop.f32.mrb[0].mxu0
  %v675 = vpop.f32.mrb[0].mxu0
  %v676 = vadd.f32 %v548, %v675
  %v677 = vpop.f32.mrb[0].mxu0
  %678 = vmatprep.mubr.bf16.mxu0 0
  %679 = vmatmul.mubr.bf16.gmra.mrb[0].mxu0 %v525
  %v680 = vpop.f32.mrb[0].mxu0
  %v681 = vadd.f32 %v548, %v680
  %v682 = vpop.f32.mrb[0].mxu0
  %v683 = vpop.f32.mrb[0].mxu0
  %v684 = vadd.f32 %v548, %v683
  %v685 = vpop.f32.mrb[0].mxu0
  %686 = vmatprep.mubr.bf16.mxu0 0
  %687 = vmatmul.mubr.bf16.gmra.mrb[0].mxu0 %v526
  %v688 = vpop.f32.mrb[0].mxu0
  %v689 = vadd.f32 %v548, %v688
  %v690 = vpop.f32.mrb[0].mxu0
  %v691 = vpop.f32.mrb[0].mxu0
  %v692 = vadd.f32 %v548, %v691
  %v693 = vpop.f32.mrb[0].mxu0
  %694 = vdwg.mxu0
  %vm695 = vcmask 56320
  %696 = vst.msk [vmem:[%s8] sm:$0xff] %vm695, %v633
  %697 = vst.msk [vmem:[%s8 + $0x8] sm:$0xff] %vm695, %v636
  %698 = vst.msk [vmem:[%s8 + $0x10] sm:$0xff] %vm695, %v641
  %699 = vst.msk [vmem:[%s8 + $0x18] sm:$0xff] %vm695, %v644
  %700 = vst.msk [vmem:[%s8 + $0x20] sm:$0xff] %vm695, %v649
  %701 = vst.msk [vmem:[%s8 + $0x28] sm:$0xff] %vm695, %v652
  %702 = vst.msk [vmem:[%s8 + $0x30] sm:$0xff] %vm695, %v657
  %703 = vst.msk [vmem:[%s8 + $0x38] sm:$0xff] %vm695, %v660
  %704 = vst.msk [vmem:[%s8 + $0x40] sm:$0xff] %vm695, %v665
  %705 = vst.msk [vmem:[%s8 + $0x48] sm:$0xff] %vm695, %v668
  %706 = vst.msk [vmem:[%s8 + $0x50] sm:$0xff] %vm695, %v673
  %707 = vst.msk [vmem:[%s8 + $0x58] sm:$0xff] %vm695, %v676
  %708 = vst.msk [vmem:[%s8 + $0x60] sm:$0xff] %vm695, %v681
  %709 = vst.msk [vmem:[%s8 + $0x68] sm:$0xff] %vm695, %v684
  %710 = vst.msk [vmem:[%s8 + $0x70] sm:$0xff] %vm695, %v689
  %711 = vst.msk [vmem:[%s8 + $0x78] sm:$0xff] %vm695, %v692
  // Predicated region
  $region30: #{_lambda_.3} parent=0 // pred_check
    _
  $region31: #{_lambda_.3} parent=0 // pred_check_branch
    %713 = sbr.rel (0) target = $region33
  $region32: #{_lambda_.3} parent=0 // pred_region
    _
  $region33: #{_lambda_.3} parent=0 // pred_fallthru
    _
  // Predicated region
  $region34: #{_lambda_.3} parent=0 // pred_check
    _
  $region35: #{_lambda_.3} parent=0 // pred_check_branch
    %715 = sbr.rel (0) target = $region37
  $region36: #{_lambda_.3} parent=0 // pred_region
    _
  $region37: #{_lambda_.3} parent=0 // pred_fallthru
    _
  // Predicated region
  $region38: #{_lambda_.3} parent=0 // pred_check
    _
  $region39: #{_lambda_.3} parent=0 // pred_check_branch
    %717 = sbr.rel (0) target = $region41
  $region40: #{_lambda_.3} parent=0 // pred_region
    _
  $region41: #{_lambda_.3} parent=0 // pred_fallthru
    _
  // Predicated region
  $region42: #{_lambda_.3} parent=0 // pred_check
    _
  $region43: #{_lambda_.3} parent=0 // pred_check_branch
    %719 = sbr.rel (0) target = $region45
  $region44: #{_lambda_.3} parent=0 // pred_region
    _
  $region45: #{_lambda_.3} parent=0 // pred_fallthru
    _

// kernel: _lambda_.4
$region0: #{_lambda_.4}
  #allocation0 [shape = 'u32[]', space=smem, size = 0x4, offset = 0x4, fixed_abs, tag = 'smem constant byte address 0x4 - core index']
  #allocation1 [shape = 'u32[144,128]{1,0:T(1,128)}', space=vmem, size = 0x12000, scoped, tag = 'internal scratch']
  %s0 = inlined_call_operand.vmem [shape: bf16[32,128], index: 0, kind: input, shape index: {}]
  %s1 = inlined_call_operand.vmem [shape: bf16[128,64], index: 1, kind: input, shape index: {}]
  %s2 = inlined_call_operand.vmem [shape: f32[1,64], index: 2, kind: input, shape index: {}]
  %s3 = inlined_call_operand.vmem [shape: bf16[64,128], index: 3, kind: input, shape index: {}]
  %s4 = inlined_call_operand.vmem [shape: f32[1,128], index: 4, kind: input, shape index: {}]
  %s5 = inlined_call_operand.vmem [shape: bf16[128,7], index: 5, kind: input, shape index: {}]
  %s6 = inlined_call_operand.vmem [shape: f32[1,7], index: 6, kind: input, shape index: {}]
  %s7 = inlined_call_operand.vmem [shape: bf16[32,64], index: 7, kind: output, shape index: {0}]
  %s8 = inlined_call_operand.hbm [shape: f32[32,7], index: 8, kind: output, shape index: {1}]
  %9 = xla_tuple %s7, %s8
  %s10 = sld [smem:[#allocation0]]
  $region46: #{_lambda_.4} parent=0
    _
  %s12 = ssub.s32 1, %s10
  %s13 = scalar_select 0, %s12, %s10
  $region1: #{_lambda_.4} parent=0
    #allocation2 [shape = 'u8[16384]{0}', space=vmem, size = 0x4000, scoped, tag = 'output window, operand 1, single buffered']
    #allocation3 [shape = 's32[1]{0}', space=sflag, size = 0x4, scoped, tag = 'scoped memory for _lambda_.4']
    %14 = vsyncpa [#allocation3], 0
    // Predicated region
    $region2: #{_lambda_.4} parent=1 // pred_check
      _
    $region3: #{_lambda_.4} parent=1 // pred_check_branch
      %16 = sbr.rel (0) target = $region5
    $region4: #{_lambda_.4} parent=1 // pred_region
      _
    $region5: #{_lambda_.4} parent=1 // pred_fallthru
      _
    // Predicated region
    $region6: #{_lambda_.4} parent=1 // pred_check
      _
    $region7: #{_lambda_.4} parent=1 // pred_check_branch
      %18 = sbr.rel (0) target = $region9
    $region8: #{_lambda_.4} parent=1 // pred_region
      _
    $region9: #{_lambda_.4} parent=1 // pred_fallthru
      _
    // Predicated region
    $region10: #{_lambda_.4} parent=1 // pred_check
      _
    $region11: #{_lambda_.4} parent=1 // pred_check_branch
      %20 = sbr.rel (0) target = $region13
    $region12: #{_lambda_.4} parent=1 // pred_region
      _
    $region13: #{_lambda_.4} parent=1 // pred_fallthru
      _
    // Predicated region
    $region14: #{_lambda_.4} parent=1 // pred_check
      _
    $region15: #{_lambda_.4} parent=1 // pred_check_branch
      %22 = sbr.rel (0) target = $region17
    $region16: #{_lambda_.4} parent=1 // pred_region
      _
    $region17: #{_lambda_.4} parent=1 // pred_fallthru
      _
    // Predicated region
    $region18: #{_lambda_.4} parent=1 // pred_check
      _
    $region19: #{_lambda_.4} parent=1 // pred_check_branch
      %24 = sbr.rel (0) target = $region21
    $region20: #{_lambda_.4} parent=1 // pred_region
      _
    $region21: #{_lambda_.4} parent=1 // pred_fallthru
      _
    // Predicated region
    $region22: #{_lambda_.4} parent=1 // pred_check
      _
    $region23: #{_lambda_.4} parent=1 // pred_check_branch
      %26 = sbr.rel (0) target = $region25
    $region24: #{_lambda_.4} parent=1 // pred_region
      _
    $region25: #{_lambda_.4} parent=1 // pred_fallthru
      _
    // Predicated region
    $region26: #{_lambda_.4} parent=1 // pred_check
      _
    $region27: #{_lambda_.4} parent=1 // pred_check_branch
      %28 = sbr.rel (0) target = $region29
    $region28: #{_lambda_.4} parent=1 // pred_region
      _
    $region29: #{_lambda_.4} parent=1 // pred_fallthru
      _
    %v30 = vld [vmem:[%s0] sm:$0xf]
    %v31 = vld [vmem:[%s0 + $0x4] sm:$0xf]
    %v32 = vld [vmem:[%s0 + $0x8] sm:$0xf]
    %v33 = vld [vmem:[%s0 + $0xc] sm:$0xf]
    %v34 = vld [vmem:[%s1] sm:$0xf]
    %v35 = vld [vmem:[%s1 + $0x4] sm:$0xf]
    %v36 = vld [vmem:[%s1 + $0x8] sm:$0xf]
    %v37 = vld [vmem:[%s1 + $0xc] sm:$0xf]
    %v38 = vld [vmem:[%s1 + $0x10] sm:$0xf]
    %v39 = vld [vmem:[%s1 + $0x14] sm:$0xf]
    %v40 = vld [vmem:[%s1 + $0x18] sm:$0xf]
    %v41 = vld [vmem:[%s1 + $0x1c] sm:$0xf]
    %v42 = vld [vmem:[%s1 + $0x20] sm:$0xf]
    %v43 = vld [vmem:[%s1 + $0x24] sm:$0xf]
    %v44 = vld [vmem:[%s1 + $0x28] sm:$0xf]
    %v45 = vld [vmem:[%s1 + $0x2c] sm:$0xf]
    %v46 = vld [vmem:[%s1 + $0x30] sm:$0xf]
    %v47 = vld [vmem:[%s1 + $0x34] sm:$0xf]
    %v48 = vld [vmem:[%s1 + $0x38] sm:$0xf]
    %v49 = vld [vmem:[%s1 + $0x3c] sm:$0xf]
    %v50 = vld [vmem:[%s2] sm:$0x1]
    %v52 = vlaneseq
    %v53 = vshrl.u32 %v52, 7
    %v54 = vsub.s32 0, %v53
    %v55 = vrot.slane %v50, %v54
    %v61 = vunpack.c.l.b16 %v30
    %v62 = vunpack.c.l.b16 %v31
    %v63 = vunpack.c.l.b16 %v32
    %v64 = vunpack.c.l.b16 %v33
    %v65 = vpack.c.b16 %v62, %v61
    %v66 = vpack.c.b16 %v64, %v63
    %v85 = vunpack.c.l.b16 %v34
    %v86 = vunpack.c.l.b16 %v35
    %v87 = vunpack.c.l.b16 %v36
    %v88 = vunpack.c.l.b16 %v37
    %v89 = vunpack.c.l.b16 %v38
    %v90 = vunpack.c.l.b16 %v39
    %v91 = vunpack.c.l.b16 %v40
    %v92 = vunpack.c.l.b16 %v41
    %v93 = vunpack.c.l.b16 %v42
    %v94 = vunpack.c.l.b16 %v43
    %v95 = vunpack.c.l.b16 %v44
    %v96 = vunpack.c.l.b16 %v45
    %v97 = vunpack.c.l.b16 %v46
    %v98 = vunpack.c.l.b16 %v47
    %v99 = vunpack.c.l.b16 %v48
    %v100 = vunpack.c.l.b16 %v49
    %v101 = vpack.c.b16 %v86, %v85
    %v102 = vpack.c.b16 %v88, %v87
    %v103 = vpack.c.b16 %v90, %v89
    %v104 = vpack.c.b16 %v92, %v91
    %v105 = vpack.c.b16 %v94, %v93
    %v106 = vpack.c.b16 %v96, %v95
    %v107 = vpack.c.b16 %v98, %v97
    %v108 = vpack.c.b16 %v100, %v99
    %117 = vmatprep.subr.bf16.mxu0 0
    %118 = vmatpush1.bf16.msra.mxu0 %v101
    %119 = vmatprep.subr.bf16.mxu0 0
    %120 = vmatpush1.bf16.msra.mxu0 %v102
    %121 = vmatprep.subr.bf16.mxu0 0
    %122 = vmatpush1.bf16.msra.mxu0 %v103
    %123 = vmatprep.subr.bf16.mxu0 0
    %124 = vmatpush1.bf16.msra.mxu0 %v104
    %125 = vmatprep.subr.bf16.mxu0 0
    %126 = vmatpush1.bf16.msra.mxu0 %v105
    %127 = vmatprep.subr.bf16.mxu0 0
    %128 = vmatpush1.bf16.msra.mxu0 %v106
    %129 = vmatprep.subr.bf16.mxu0 0
    %130 = vmatpush1.bf16.msra.mxu0 %v107
    %131 = vmatprep.subr.bf16.mxu0 0
    %132 = vmatpush1.bf16.msra.mxu0 %v108
    %133 = vmatprep.subr.bf16.mxu0 0
    %134 = vmatpush1.bf16.msra.mxu0 0
    %135 = vmatprep.subr.bf16.mxu0 0
    %136 = vmatpush1.bf16.msra.mxu0 0
    %137 = vmatprep.subr.bf16.mxu0 0
    %138 = vmatpush1.bf16.msra.mxu0 0
    %139 = vmatprep.subr.bf16.mxu0 0
    %140 = vmatpush1.bf16.msra.mxu0 0
    %141 = vmatprep.subr.bf16.mxu0 0
    %142 = vmatpush1.bf16.msra.mxu0 0
    %143 = vmatprep.subr.bf16.mxu0 0
    %144 = vmatpush1.bf16.msra.mxu0 0
    %145 = vmatprep.subr.bf16.mxu0 0
    %146 = vmatpush1.bf16.msra.mxu0 0
    %147 = vmatprep.subr.bf16.mxu0 0
    %148 = vmatpush1.bf16.msra.mxu0 0
    %149 = vmatprep.mubr.bf16.mxu0 0
    %150 = vmatmul.mubr.bf16.gmra.mrb[0].mxu0 %v65
    %v151 = vpop.f32.mrb[0].mxu0
    %v152 = vadd.f32 %v55, %v151
    %v153 = vpop.f32.mrb[0].mxu0
    %v154 = vpop.f32.mrb[0].mxu0
    %v155 = vadd.f32 %v55, %v154
    %v156 = vpop.f32.mrb[0].mxu0
    %157 = vmatprep.mubr.bf16.mxu0 0
    %158 = vmatmul.mubr.bf16.gmra.mrb[0].mxu0 %v66
    %v159 = vpop.f32.mrb[0].mxu0
    %v160 = vadd.f32 %v55, %v159
    %v161 = vpop.f32.mrb[0].mxu0
    %v162 = vpop.f32.mrb[0].mxu0
    %v163 = vadd.f32 %v55, %v162
    %v164 = vpop.f32.mrb[0].mxu0
    %165 = vdwg.mxu0
    %v166 = vmax.f32 %v152, 0.0
    %v167 = vmax.f32 %v155, 0.0
    %v168 = vmax.f32 %v160, 0.0
    %v169 = vmax.f32 %v163, 0.0
    %v170 = vpack.c.bf16 %v167, %v166
    %v171 = vpack.c.bf16 %v169, %v168
    %v174 = vunpack.c.l.b16 %v170
    %v175 = vunpack.c.h.b16 %v170
    %v176 = vunpack.c.l.b16 %v171
    %v177 = vunpack.c.h.b16 %v171
    %v178 = vpack.c.b16 %v174, %v174
    %v179 = vpack.c.b16 %v175, %v175
    %v180 = vpack.c.b16 %v176, %v176
    %v181 = vpack.c.b16 %v177, %v177
    %vm186 = vcmask 519168
    %187 = vst.msk [vmem:[%s7] sm:$0xf] %vm186, %v178
    %188 = vst.msk [vmem:[%s7 + $0x4] sm:$0xf] %vm186, %v179
    %189 = vst.msk [vmem:[%s7 + $0x8] sm:$0xf] %vm186, %v180
    %190 = vst.msk [vmem:[%s7 + $0xc] sm:$0xf] %vm186, %v181
    %v191 = vld [vmem:[%s3] sm:$0xf]
    %v192 = vld [vmem:[%s3 + $0x4] sm:$0xf]
    %v193 = vld [vmem:[%s3 + $0x8] sm:$0xf]
    %v194 = vld [vmem:[%s3 + $0xc] sm:$0xf]
    %v195 = vld [vmem:[%s3 + $0x10] sm:$0xf]
    %v196 = vld [vmem:[%s3 + $0x14] sm:$0xf]
    %v197 = vld [vmem:[%s3 + $0x18] sm:$0xf]
    %v198 = vld [vmem:[%s3 + $0x1c] sm:$0xf]
    %v199 = vld [vmem:[%s4] sm:$0x1]
    %v201 = vlaneseq
    %v202 = vshrl.u32 %v201, 7
    %v203 = vsub.s32 0, %v202
    %v204 = vrot.slane %v199, %v203
    %v214 = vunpack.c.l.b16 %v191
    %v215 = vunpack.c.l.b16 %v192
    %v216 = vunpack.c.l.b16 %v193
    %v217 = vunpack.c.l.b16 %v194
    %v218 = vunpack.c.l.b16 %v195
    %v219 = vunpack.c.l.b16 %v196
    %v220 = vunpack.c.l.b16 %v197
    %v221 = vunpack.c.l.b16 %v198
    %v222 = vpack.c.b16 %v215, %v214
    %v223 = vpack.c.b16 %v217, %v216
    %v224 = vpack.c.b16 %v219, %v218
    %v225 = vpack.c.b16 %v221, %v220
    %vm230 = vcmask 523264
    %v232 = vsel %vm230, %v170, 0
    %v235 = vsel %vm230, %v171, 0
    %237 = vmatprep.subr.bf16.mxu0 0
    %238 = vmatpush1.bf16.msra.mxu0 %v222
    %239 = vmatprep.subr.bf16.mxu0 0
    %240 = vmatpush1.bf16.msra.mxu0 %v223
    %241 = vmatprep.subr.bf16.mxu0 0
    %242 = vmatpush1.bf16.msra.mxu0 %v224
    %243 = vmatprep.subr.bf16.mxu0 0
    %244 = vmatpush1.bf16.msra.mxu0 %v225
    %245 = vmatprep.subr.bf16.mxu0 0
    %246 = vmatpush1.bf16.msra.mxu0 0
    %247 = vmatprep.subr.bf16.mxu0 0
    %248 = vmatpush1.bf16.msra.mxu0 0
    %249 = vmatprep.subr.bf16.mxu0 0
    %250 = vmatpush1.bf16.msra.mxu0 0
    %251 = vmatprep.subr.bf16.mxu0 0
    %252 = vmatpush1.bf16.msra.mxu0 0
    %253 = vmatprep.subr.bf16.mxu0 0
    %254 = vmatpush1.bf16.msra.mxu0 0
    %255 = vmatprep.subr.bf16.mxu0 0
    %256 = vmatpush1.bf16.msra.mxu0 0
    %257 = vmatprep.subr.bf16.mxu0 0
    %258 = vmatpush1.bf16.msra.mxu0 0
    %259 = vmatprep.subr.bf16.mxu0 0
    %260 = vmatpush1.bf16.msra.mxu0 0
    %261 = vmatprep.subr.bf16.mxu0 0
    %262 = vmatpush1.bf16.msra.mxu0 0
    %263 = vmatprep.subr.bf16.mxu0 0
    %264 = vmatpush1.bf16.msra.mxu0 0
    %265 = vmatprep.subr.bf16.mxu0 0
    %266 = vmatpush1.bf16.msra.mxu0 0
    %267 = vmatprep.subr.bf16.mxu0 0
    %268 = vmatpush1.bf16.msra.mxu0 0
    %269 = vmatprep.mubr.bf16.mxu0 0
    %270 = vmatmul.mubr.bf16.gmra.mrb[0].mxu0 %v232
    %v271 = vpop.f32.mrb[0].mxu0
    %v272 = vadd.f32 %v204, %v271
    %v273 = vpop.f32.mrb[0].mxu0
    %v274 = vpop.f32.mrb[0].mxu0
    %v275 = vadd.f32 %v204, %v274
    %v276 = vpop.f32.mrb[0].mxu0
    %277 = vmatprep.mubr.bf16.mxu0 0
    %278 = vmatmul.mubr.bf16.gmra.mrb[0].mxu0 %v235
    %v279 = vpop.f32.mrb[0].mxu0
    %v280 = vadd.f32 %v204, %v279
    %v281 = vpop.f32.mrb[0].mxu0
    %v282 = vpop.f32.mrb[0].mxu0
    %v283 = vadd.f32 %v204, %v282
    %v284 = vpop.f32.mrb[0].mxu0
    %285 = vdwg.mxu0
    %v286 = vmax.f32 %v272, 0.0
    %v287 = vmax.f32 %v275, 0.0
    %v288 = vmax.f32 %v280, 0.0
    %v289 = vmax.f32 %v283, 0.0
    %v290 = vpack.c.bf16 %v287, %v286
    %v291 = vpack.c.bf16 %v289, %v288
    %v292 = vld [vmem:[%s5] sm:$0xf]
    %v293 = vld [vmem:[%s5 + $0x4] sm:$0xf]
    %v294 = vld [vmem:[%s5 + $0x8] sm:$0xf]
    %v295 = vld [vmem:[%s5 + $0xc] sm:$0xf]
    %v296 = vld [vmem:[%s5 + $0x10] sm:$0xf]
    %v297 = vld [vmem:[%s5 + $0x14] sm:$0xf]
    %v298 = vld [vmem:[%s5 + $0x18] sm:$0xf]
    %v299 = vld [vmem:[%s5 + $0x1c] sm:$0xf]
    %v300 = vld [vmem:[%s5 + $0x20] sm:$0xf]
    %v301 = vld [vmem:[%s5 + $0x24] sm:$0xf]
    %v302 = vld [vmem:[%s5 + $0x28] sm:$0xf]
    %v303 = vld [vmem:[%s5 + $0x2c] sm:$0xf]
    %v304 = vld [vmem:[%s5 + $0x30] sm:$0xf]
    %v305 = vld [vmem:[%s5 + $0x34] sm:$0xf]
    %v306 = vld [vmem:[%s5 + $0x38] sm:$0xf]
    %v307 = vld [vmem:[%s5 + $0x3c] sm:$0xf]
    %v308 = vld [vmem:[%s6] sm:$0x1]
    %v310 = vlaneseq
    %v311 = vshrl.u32 %v310, 7
    %v312 = vsub.s32 0, %v311
    %v313 = vrot.slane %v308, %v312
    %v331 = vunpack.c.l.b16 %v292
    %v332 = vunpack.c.l.b16 %v293
    %v333 = vunpack.c.l.b16 %v294
    %v334 = vunpack.c.l.b16 %v295
    %v335 = vunpack.c.l.b16 %v296
    %v336 = vunpack.c.l.b16 %v297
    %v337 = vunpack.c.l.b16 %v298
    %v338 = vunpack.c.l.b16 %v299
    %v339 = vunpack.c.l.b16 %v300
    %v340 = vunpack.c.l.b16 %v301
    %v341 = vunpack.c.l.b16 %v302
    %v342 = vunpack.c.l.b16 %v303
    %v343 = vunpack.c.l.b16 %v304
    %v344 = vunpack.c.l.b16 %v305
    %v345 = vunpack.c.l.b16 %v306
    %v346 = vunpack.c.l.b16 %v307
    %v347 = vpack.c.b16 %v332, %v331
    %v348 = vpack.c.b16 %v334, %v333
    %v349 = vpack.c.b16 %v336, %v335
    %v350 = vpack.c.b16 %v338, %v337
    %v351 = vpack.c.b16 %v340, %v339
    %v352 = vpack.c.b16 %v342, %v341
    %v353 = vpack.c.b16 %v344, %v343
    %v354 = vpack.c.b16 %v346, %v345
    %363 = vmatprep.subr.bf16.mxu0 0
    %364 = vmatpush1.bf16.msra.mxu0 %v347
    %365 = vmatprep.subr.bf16.mxu0 0
    %366 = vmatpush1.bf16.msra.mxu0 %v348
    %367 = vmatprep.subr.bf16.mxu0 0
    %368 = vmatpush1.bf16.msra.mxu0 %v349
    %369 = vmatprep.subr.bf16.mxu0 0
    %370 = vmatpush1.bf16.msra.mxu0 %v350
    %371 = vmatprep.subr.bf16.mxu0 0
    %372 = vmatpush1.bf16.msra.mxu0 %v351
    %373 = vmatprep.subr.bf16.mxu0 0
    %374 = vmatpush1.bf16.msra.mxu0 %v352
    %375 = vmatprep.subr.bf16.mxu0 0
    %376 = vmatpush1.bf16.msra.mxu0 %v353
    %377 = vmatprep.subr.bf16.mxu0 0
    %378 = vmatpush1.bf16.msra.mxu0 %v354
    %379 = vmatprep.subr.bf16.mxu0 0
    %380 = vmatpush1.bf16.msra.mxu0 0
    %381 = vmatprep.subr.bf16.mxu0 0
    %382 = vmatpush1.bf16.msra.mxu0 0
    %383 = vmatprep.subr.bf16.mxu0 0
    %384 = vmatpush1.bf16.msra.mxu0 0
    %385 = vmatprep.subr.bf16.mxu0 0
    %386 = vmatpush1.bf16.msra.mxu0 0
    %387 = vmatprep.subr.bf16.mxu0 0
    %388 = vmatpush1.bf16.msra.mxu0 0
    %389 = vmatprep.subr.bf16.mxu0 0
    %390 = vmatpush1.bf16.msra.mxu0 0
    %391 = vmatprep.subr.bf16.mxu0 0
    %392 = vmatpush1.bf16.msra.mxu0 0
    %393 = vmatprep.subr.bf16.mxu0 0
    %394 = vmatpush1.bf16.msra.mxu0 0
    %395 = vmatprep.mubr.bf16.mxu0 0
    %396 = vmatmul.mubr.bf16.gmra.mrb[0].mxu0 %v290
    %v397 = vpop.f32.mrb[0].mxu0
    %v398 = vadd.f32 %v313, %v397
    %v399 = vpop.f32.mrb[0].mxu0
    %v400 = vpop.f32.mrb[0].mxu0
    %v401 = vadd.f32 %v313, %v400
    %v402 = vpop.f32.mrb[0].mxu0
    %403 = vmatprep.mubr.bf16.mxu0 0
    %404 = vmatmul.mubr.bf16.gmra.mrb[0].mxu0 %v291
    %v405 = vpop.f32.mrb[0].mxu0
    %v406 = vadd.f32 %v313, %v405
    %v407 = vpop.f32.mrb[0].mxu0
    %v408 = vpop.f32.mrb[0].mxu0
    %v409 = vadd.f32 %v313, %v408
    %v410 = vpop.f32.mrb[0].mxu0
    %411 = vdwg.mxu0
    %vm412 = vcmask 56320
    %413 = vst.msk [vmem:[#allocation2] sm:$0xff] %vm412, %v398
    %414 = vst.msk [vmem:[#allocation2 + $0x8] sm:$0xff] %vm412, %v401
    %415 = vst.msk [vmem:[#allocation2 + $0x10] sm:$0xff] %vm412, %v406
    %416 = vst.msk [vmem:[#allocation2 + $0x18] sm:$0xff] %vm412, %v409
    // Predicated region
    $region30: #{_lambda_.4} parent=1 // pred_check
      _
    $region31: #{_lambda_.4} parent=1 // pred_check_branch
      %418 = sbr.rel (0) target = $region33
    $region32: #{_lambda_.4} parent=1 // pred_region
      _
    $region33: #{_lambda_.4} parent=1 // pred_fallthru
      _
    // Predicated region
    $region34: #{_lambda_.4} parent=1 // pred_check
      _
    $region35: #{_lambda_.4} parent=1 // pred_check_branch
      %420 = sbr.rel (0) target = $region37
    $region36: #{_lambda_.4} parent=1 // pred_region
      %s422 = ssub.s32 512, 512
      %423 = vsyncadd [#allocation3], %s422
      %s424 = sshll.u32 [#allocation2], 4
      %s425 = int_to_ptr.vmem [resolvable:$true] %s424
      %430 = dma.vmem_to_hbm [thread:$0]  %s425, 512, %s8, [#allocation3], 128, 128, 8
    $region37: #{_lambda_.4} parent=1 // pred_fallthru
      _
    // Predicated region
    $region38: #{_lambda_.4} parent=1 // pred_check
      _
    $region39: #{_lambda_.4} parent=1 // pred_check_branch
      %432 = sbr.rel (0) target = $region41
    $region40: #{_lambda_.4} parent=1 // pred_region
      _
    $region41: #{_lambda_.4} parent=1 // pred_fallthru
      _
    // Predicated region
    $region42: #{_lambda_.4} parent=1 // pred_check
      _
    $region43: #{_lambda_.4} parent=1 // pred_check_branch
      %434 = sbr.rel (0) target = $region45
    $region44: #{_lambda_.4} parent=1 // pred_region
      %435 = dma.done [#allocation3], 512
    $region45: #{_lambda_.4} parent=1 // pred_fallthru
      _
    %436 = vsyncpa [#allocation3], 1

// kernel: _lambda_.5
$region0: #{_lambda_.5}
  #allocation0 [shape = 'u32[]', space=smem, size = 0x4, offset = 0x4, fixed_abs, tag = 'smem constant byte address 0x4 - core index']
  #allocation1 [shape = 'u32[144,128]{1,0:T(1,128)}', space=vmem, size = 0x12000, scoped, tag = 'internal scratch']
  %s0 = inlined_call_operand.vmem [shape: bf16[8,256], index: 0, kind: input, shape index: {}]
  %s1 = inlined_call_operand.vmem [shape: bf16[256,128], index: 1, kind: input, shape index: {}]
  %s2 = inlined_call_operand.vmem [shape: f32[1,128], index: 2, kind: input, shape index: {}]
  %s3 = inlined_call_operand.vmem [shape: bf16[128,128], index: 3, kind: input, shape index: {}]
  %s4 = inlined_call_operand.vmem [shape: f32[1,128], index: 4, kind: input, shape index: {}]
  %s5 = inlined_call_operand.vmem [shape: bf16[128,7], index: 5, kind: input, shape index: {}]
  %s6 = inlined_call_operand.vmem [shape: f32[1,7], index: 6, kind: input, shape index: {}]
  %s7 = inlined_call_operand.hbm [shape: f32[8,7], index: 7, kind: output, shape index: {}]
  %s8 = sld [smem:[#allocation0]]
  $region38: #{_lambda_.5} parent=0
    _
  %s10 = ssub.s32 1, %s8
  %s11 = scalar_select 0, %s10, %s8
  $region1: #{_lambda_.5} parent=0
    #allocation2 [shape = 'u8[4096]{0}', space=vmem, size = 0x1000, scoped, tag = 'output window, operand 0, single buffered']
    #allocation3 [shape = 's32[1]{0}', space=sflag, size = 0x4, scoped, tag = 'scoped memory for _lambda_.5']
    %12 = vsyncpa [#allocation3], 0
    // Predicated region
    $region2: #{_lambda_.5} parent=1 // pred_check
      _
    $region3: #{_lambda_.5} parent=1 // pred_check_branch
      %14 = sbr.rel (0) target = $region5
    $region4: #{_lambda_.5} parent=1 // pred_region
      _
    $region5: #{_lambda_.5} parent=1 // pred_fallthru
      _
    // Predicated region
    $region6: #{_lambda_.5} parent=1 // pred_check
      _
    $region7: #{_lambda_.5} parent=1 // pred_check_branch
      %16 = sbr.rel (0) target = $region9
    $region8: #{_lambda_.5} parent=1 // pred_region
      _
    $region9: #{_lambda_.5} parent=1 // pred_fallthru
      _
    // Predicated region
    $region10: #{_lambda_.5} parent=1 // pred_check
      _
    $region11: #{_lambda_.5} parent=1 // pred_check_branch
      %18 = sbr.rel (0) target = $region13
    $region12: #{_lambda_.5} parent=1 // pred_region
      _
    $region13: #{_lambda_.5} parent=1 // pred_fallthru
      _
    // Predicated region
    $region14: #{_lambda_.5} parent=1 // pred_check
      _
    $region15: #{_lambda_.5} parent=1 // pred_check_branch
      %20 = sbr.rel (0) target = $region17
    $region16: #{_lambda_.5} parent=1 // pred_region
      _
    $region17: #{_lambda_.5} parent=1 // pred_fallthru
      _
    // Predicated region
    $region18: #{_lambda_.5} parent=1 // pred_check
      _
    $region19: #{_lambda_.5} parent=1 // pred_check_branch
      %22 = sbr.rel (0) target = $region21
    $region20: #{_lambda_.5} parent=1 // pred_region
      _
    $region21: #{_lambda_.5} parent=1 // pred_fallthru
      _
    // Predicated region
    $region22: #{_lambda_.5} parent=1 // pred_check
      _
    $region23: #{_lambda_.5} parent=1 // pred_check_branch
      %24 = sbr.rel (0) target = $region25
    $region24: #{_lambda_.5} parent=1 // pred_region
      _
    $region25: #{_lambda_.5} parent=1 // pred_fallthru
      _
    // Predicated region
    $region26: #{_lambda_.5} parent=1 // pred_check
      _
    $region27: #{_lambda_.5} parent=1 // pred_check_branch
      %26 = sbr.rel (0) target = $region29
    $region28: #{_lambda_.5} parent=1 // pred_region
      _
    $region29: #{_lambda_.5} parent=1 // pred_fallthru
      _
    %v28 = vld [vmem:[%s0] sm:$0xff]
    %v29 = vld [vmem:[%s1] sm:$0xf]
    %v30 = vld [vmem:[%s1 + $0x4] sm:$0xf]
    %v31 = vld [vmem:[%s1 + $0x8] sm:$0xf]
    %v32 = vld [vmem:[%s1 + $0xc] sm:$0xf]
    %v33 = vld [vmem:[%s1 + $0x10] sm:$0xf]
    %v34 = vld [vmem:[%s1 + $0x14] sm:$0xf]
    %v35 = vld [vmem:[%s1 + $0x18] sm:$0xf]
    %v36 = vld [vmem:[%s1 + $0x1c] sm:$0xf]
    %v37 = vld [vmem:[%s1 + $0x20] sm:$0xf]
    %v38 = vld [vmem:[%s1 + $0x24] sm:$0xf]
    %v39 = vld [vmem:[%s1 + $0x28] sm:$0xf]
    %v40 = vld [vmem:[%s1 + $0x2c] sm:$0xf]
    %v41 = vld [vmem:[%s1 + $0x30] sm:$0xf]
    %v42 = vld [vmem:[%s1 + $0x34] sm:$0xf]
    %v43 = vld [vmem:[%s1 + $0x38] sm:$0xf]
    %v44 = vld [vmem:[%s1 + $0x3c] sm:$0xf]
    %v45 = vld [vmem:[%s1 + $0x40] sm:$0xf]
    %v46 = vld [vmem:[%s1 + $0x44] sm:$0xf]
    %v47 = vld [vmem:[%s1 + $0x48] sm:$0xf]
    %v48 = vld [vmem:[%s1 + $0x4c] sm:$0xf]
    %v49 = vld [vmem:[%s1 + $0x50] sm:$0xf]
    %v50 = vld [vmem:[%s1 + $0x54] sm:$0xf]
    %v51 = vld [vmem:[%s1 + $0x58] sm:$0xf]
    %v52 = vld [vmem:[%s1 + $0x5c] sm:$0xf]
    %v53 = vld [vmem:[%s1 + $0x60] sm:$0xf]
    %v54 = vld [vmem:[%s1 + $0x64] sm:$0xf]
    %v55 = vld [vmem:[%s1 + $0x68] sm:$0xf]
    %v56 = vld [vmem:[%s1 + $0x6c] sm:$0xf]
    %v57 = vld [vmem:[%s1 + $0x70] sm:$0xf]
    %v58 = vld [vmem:[%s1 + $0x74] sm:$0xf]
    %v59 = vld [vmem:[%s1 + $0x78] sm:$0xf]
    %v60 = vld [vmem:[%s1 + $0x7c] sm:$0xf]
    %v61 = vld [vmem:[%s2] sm:$0x1]
    %v63 = vlaneseq
    %v64 = vshrl.u32 %v63, 7
    %v65 = vsub.s32 0, %v64
    %v66 = vrot.slane %v61, %v65
    %v69 = vunpack.c.l.b16 %v28
    %v70 = vunpack.c.h.b16 %v28
    %v71 = vpack.c.b16 %v69, %v69
    %v72 = vpack.c.b16 %v70, %v70
    %v107 = vunpack.c.l.b16 %v29
    %v108 = vunpack.c.l.b16 %v30
    %v109 = vunpack.c.l.b16 %v31
    %v110 = vunpack.c.l.b16 %v32
    %v111 = vunpack.c.l.b16 %v33
    %v112 = vunpack.c.l.b16 %v34
    %v113 = vunpack.c.l.b16 %v35
    %v114 = vunpack.c.l.b16 %v36
    %v115 = vunpack.c.l.b16 %v37
    %v116 = vunpack.c.l.b16 %v38
    %v117 = vunpack.c.l.b16 %v39
    %v118 = vunpack.c.l.b16 %v40
    %v119 = vunpack.c.l.b16 %v41
    %v120 = vunpack.c.l.b16 %v42
    %v121 = vunpack.c.l.b16 %v43
    %v122 = vunpack.c.l.b16 %v44
    %v123 = vunpack.c.l.b16 %v45
    %v124 = vunpack.c.l.b16 %v46
    %v125 = vunpack.c.l.b16 %v47
    %v126 = vunpack.c.l.b16 %v48
    %v127 = vunpack.c.l.b16 %v49
    %v128 = vunpack.c.l.b16 %v50
    %v129 = vunpack.c.l.b16 %v51
    %v130 = vunpack.c.l.b16 %v52
    %v131 = vunpack.c.l.b16 %v53
    %v132 = vunpack.c.l.b16 %v54
    %v133 = vunpack.c.l.b16 %v55
    %v134 = vunpack.c.l.b16 %v56
    %v135 = vunpack.c.l.b16 %v57
    %v136 = vunpack.c.l.b16 %v58
    %v137 = vunpack.c.l.b16 %v59
    %v138 = vunpack.c.l.b16 %v60
    %v139 = vpack.c.b16 %v108, %v107
    %v140 = vpack.c.b16 %v110, %v109
    %v141 = vpack.c.b16 %v112, %v111
    %v142 = vpack.c.b16 %v114, %v113
    %v143 = vpack.c.b16 %v116, %v115
    %v144 = vpack.c.b16 %v118, %v117
    %v145 = vpack.c.b16 %v120, %v119
    %v146 = vpack.c.b16 %v122, %v121
    %v147 = vpack.c.b16 %v124, %v123
    %v148 = vpack.c.b16 %v126, %v125
    %v149 = vpack.c.b16 %v128, %v127
    %v150 = vpack.c.b16 %v130, %v129
    %v151 = vpack.c.b16 %v132, %v131
    %v152 = vpack.c.b16 %v134, %v133
    %v153 = vpack.c.b16 %v136, %v135
    %v154 = vpack.c.b16 %v138, %v137
    %171 = vmatprep.subr.bf16.mxu0 0
    %172 = vmatpush1.bf16.msra.mxu0 %v139
    %173 = vmatprep.subr.bf16.mxu0 0
    %174 = vmatpush1.bf16.msra.mxu0 %v140
    %175 = vmatprep.subr.bf16.mxu0 0
    %176 = vmatpush1.bf16.msra.mxu0 %v141
    %177 = vmatprep.subr.bf16.mxu0 0
    %178 = vmatpush1.bf16.msra.mxu0 %v142
    %179 = vmatprep.subr.bf16.mxu0 0
    %180 = vmatpush1.bf16.msra.mxu0 %v143
    %181 = vmatprep.subr.bf16.mxu0 0
    %182 = vmatpush1.bf16.msra.mxu0 %v144
    %183 = vmatprep.subr.bf16.mxu0 0
    %184 = vmatpush1.bf16.msra.mxu0 %v145
    %185 = vmatprep.subr.bf16.mxu0 0
    %186 = vmatpush1.bf16.msra.mxu0 %v146
    %187 = vmatprep.subr.bf16.mxu0 0
    %188 = vmatpush1.bf16.msra.mxu0 %v147
    %189 = vmatprep.subr.bf16.mxu0 0
    %190 = vmatpush1.bf16.msra.mxu0 %v148
    %191 = vmatprep.subr.bf16.mxu0 0
    %192 = vmatpush1.bf16.msra.mxu0 %v149
    %193 = vmatprep.subr.bf16.mxu0 0
    %194 = vmatpush1.bf16.msra.mxu0 %v150
    %195 = vmatprep.subr.bf16.mxu0 0
    %196 = vmatpush1.bf16.msra.mxu0 %v151
    %197 = vmatprep.subr.bf16.mxu0 0
    %198 = vmatpush1.bf16.msra.mxu0 %v152
    %199 = vmatprep.subr.bf16.mxu0 0
    %200 = vmatpush1.bf16.msra.mxu0 %v153
    %201 = vmatprep.subr.bf16.mxu0 0
    %202 = vmatpush1.bf16.msra.mxu0 %v154
    %203 = vmatprep.mubr.bf16.mxu0 %v72
    %204 = vmatmul.mubr.bf16.gmra.mrb[0].mxu0 %v71
    %v205 = vpop.f32.mrb[0].mxu0
    %v206 = vadd.f32 %v66, %v205
    %v207 = vpop.f32.mrb[0].mxu0
    %v208 = vpop.f32.mrb[0].mxu0
    %v209 = vpop.f32.mrb[0].mxu0
    %210 = vdwg.mxu0
    %v211 = vmax.f32 %v206, 0.0
    %v212 = vpack.c.bf16 %v211, %v211
    %v213 = vld [vmem:[%s3] sm:$0xf]
    %v214 = vld [vmem:[%s3 + $0x4] sm:$0xf]
    %v215 = vld [vmem:[%s3 + $0x8] sm:$0xf]
    %v216 = vld [vmem:[%s3 + $0xc] sm:$0xf]
    %v217 = vld [vmem:[%s3 + $0x10] sm:$0xf]
    %v218 = vld [vmem:[%s3 + $0x14] sm:$0xf]
    %v219 = vld [vmem:[%s3 + $0x18] sm:$0xf]
    %v220 = vld [vmem:[%s3 + $0x1c] sm:$0xf]
    %v221 = vld [vmem:[%s3 + $0x20] sm:$0xf]
    %v222 = vld [vmem:[%s3 + $0x24] sm:$0xf]
    %v223 = vld [vmem:[%s3 + $0x28] sm:$0xf]
    %v224 = vld [vmem:[%s3 + $0x2c] sm:$0xf]
    %v225 = vld [vmem:[%s3 + $0x30] sm:$0xf]
    %v226 = vld [vmem:[%s3 + $0x34] sm:$0xf]
    %v227 = vld [vmem:[%s3 + $0x38] sm:$0xf]
    %v228 = vld [vmem:[%s3 + $0x3c] sm:$0xf]
    %v229 = vld [vmem:[%s4] sm:$0x1]
    %v231 = vlaneseq
    %v232 = vshrl.u32 %v231, 7
    %v233 = vsub.s32 0, %v232
    %v234 = vrot.slane %v229, %v233
    %v252 = vunpack.c.l.b16 %v213
    %v253 = vunpack.c.l.b16 %v214
    %v254 = vunpack.c.l.b16 %v215
    %v255 = vunpack.c.l.b16 %v216
    %v256 = vunpack.c.l.b16 %v217
    %v257 = vunpack.c.l.b16 %v218
    %v258 = vunpack.c.l.b16 %v219
    %v259 = vunpack.c.l.b16 %v220
    %v260 = vunpack.c.l.b16 %v221
    %v261 = vunpack.c.l.b16 %v222
    %v262 = vunpack.c.l.b16 %v223
    %v263 = vunpack.c.l.b16 %v224
    %v264 = vunpack.c.l.b16 %v225
    %v265 = vunpack.c.l.b16 %v226
    %v266 = vunpack.c.l.b16 %v227
    %v267 = vunpack.c.l.b16 %v228
    %v268 = vpack.c.b16 %v253, %v252
    %v269 = vpack.c.b16 %v255, %v254
    %v270 = vpack.c.b16 %v257, %v256
    %v271 = vpack.c.b16 %v259, %v258
    %v272 = vpack.c.b16 %v261, %v260
    %v273 = vpack.c.b16 %v263, %v262
    %v274 = vpack.c.b16 %v265, %v264
    %v275 = vpack.c.b16 %v267, %v266
    %284 = vmatprep.subr.bf16.mxu0 0
    %285 = vmatpush1.bf16.msra.mxu0 %v268
    %286 = vmatprep.subr.bf16.mxu0 0
    %287 = vmatpush1.bf16.msra.mxu0 %v269
    %288 = vmatprep.subr.bf16.mxu0 0
    %289 = vmatpush1.bf16.msra.mxu0 %v270
    %290 = vmatprep.subr.bf16.mxu0 0
    %291 = vmatpush1.bf16.msra.mxu0 %v271
    %292 = vmatprep.subr.bf16.mxu0 0
    %293 = vmatpush1.bf16.msra.mxu0 %v272
    %294 = vmatprep.subr.bf16.mxu0 0
    %295 = vmatpush1.bf16.msra.mxu0 %v273
    %296 = vmatprep.subr.bf16.mxu0 0
    %297 = vmatpush1.bf16.msra.mxu0 %v274
    %298 = vmatprep.subr.bf16.mxu0 0
    %299 = vmatpush1.bf16.msra.mxu0 %v275
    %300 = vmatprep.subr.bf16.mxu0 0
    %301 = vmatpush1.bf16.msra.mxu0 0
    %302 = vmatprep.subr.bf16.mxu0 0
    %303 = vmatpush1.bf16.msra.mxu0 0
    %304 = vmatprep.subr.bf16.mxu0 0
    %305 = vmatpush1.bf16.msra.mxu0 0
    %306 = vmatprep.subr.bf16.mxu0 0
    %307 = vmatpush1.bf16.msra.mxu0 0
    %308 = vmatprep.subr.bf16.mxu0 0
    %309 = vmatpush1.bf16.msra.mxu0 0
    %310 = vmatprep.subr.bf16.mxu0 0
    %311 = vmatpush1.bf16.msra.mxu0 0
    %312 = vmatprep.subr.bf16.mxu0 0
    %313 = vmatpush1.bf16.msra.mxu0 0
    %314 = vmatprep.subr.bf16.mxu0 0
    %315 = vmatpush1.bf16.msra.mxu0 0
    %316 = vmatprep.mubr.bf16.mxu0 0
    %317 = vmatmul.mubr.bf16.gmra.mrb[0].mxu0 %v212
    %v318 = vpop.f32.mrb[0].mxu0
    %v319 = vadd.f32 %v234, %v318
    %v320 = vpop.f32.mrb[0].mxu0
    %v321 = vpop.f32.mrb[0].mxu0
    %v322 = vpop.f32.mrb[0].mxu0
    %323 = vdwg.mxu0
    %v324 = vmax.f32 %v319, 0.0
    %v325 = vpack.c.bf16 %v324, %v324
    %v326 = vld [vmem:[%s5] sm:$0xf]
    %v327 = vld [vmem:[%s5 + $0x4] sm:$0xf]
    %v328 = vld [vmem:[%s5 + $0x8] sm:$0xf]
    %v329 = vld [vmem:[%s5 + $0xc] sm:$0xf]
    %v330 = vld [vmem:[%s5 + $0x10] sm:$0xf]
    %v331 = vld [vmem:[%s5 + $0x14] sm:$0xf]
    %v332 = vld [vmem:[%s5 + $0x18] sm:$0xf]
    %v333 = vld [vmem:[%s5 + $0x1c] sm:$0xf]
    %v334 = vld [vmem:[%s5 + $0x20] sm:$0xf]
    %v335 = vld [vmem:[%s5 + $0x24] sm:$0xf]
    %v336 = vld [vmem:[%s5 + $0x28] sm:$0xf]
    %v337 = vld [vmem:[%s5 + $0x2c] sm:$0xf]
    %v338 = vld [vmem:[%s5 + $0x30] sm:$0xf]
    %v339 = vld [vmem:[%s5 + $0x34] sm:$0xf]
    %v340 = vld [vmem:[%s5 + $0x38] sm:$0xf]
    %v341 = vld [vmem:[%s5 + $0x3c] sm:$0xf]
    %v342 = vld [vmem:[%s6] sm:$0x1]
    %v344 = vlaneseq
    %v345 = vshrl.u32 %v344, 7
    %v346 = vsub.s32 0, %v345
    %v347 = vrot.slane %v342, %v346
    %v365 = vunpack.c.l.b16 %v326
    %v366 = vunpack.c.l.b16 %v327
    %v367 = vunpack.c.l.b16 %v328
    %v368 = vunpack.c.l.b16 %v329
    %v369 = vunpack.c.l.b16 %v330
    %v370 = vunpack.c.l.b16 %v331
    %v371 = vunpack.c.l.b16 %v332
    %v372 = vunpack.c.l.b16 %v333
    %v373 = vunpack.c.l.b16 %v334
    %v374 = vunpack.c.l.b16 %v335
    %v375 = vunpack.c.l.b16 %v336
    %v376 = vunpack.c.l.b16 %v337
    %v377 = vunpack.c.l.b16 %v338
    %v378 = vunpack.c.l.b16 %v339
    %v379 = vunpack.c.l.b16 %v340
    %v380 = vunpack.c.l.b16 %v341
    %v381 = vpack.c.b16 %v366, %v365
    %v382 = vpack.c.b16 %v368, %v367
    %v383 = vpack.c.b16 %v370, %v369
    %v384 = vpack.c.b16 %v372, %v371
    %v385 = vpack.c.b16 %v374, %v373
    %v386 = vpack.c.b16 %v376, %v375
    %v387 = vpack.c.b16 %v378, %v377
    %v388 = vpack.c.b16 %v380, %v379
    %397 = vmatprep.subr.bf16.mxu0 0
    %398 = vmatpush1.bf16.msra.mxu0 %v381
    %399 = vmatprep.subr.bf16.mxu0 0
    %400 = vmatpush1.bf16.msra.mxu0 %v382
    %401 = vmatprep.subr.bf16.mxu0 0
    %402 = vmatpush1.bf16.msra.mxu0 %v383
    %403 = vmatprep.subr.bf16.mxu0 0
    %404 = vmatpush1.bf16.msra.mxu0 %v384
    %405 = vmatprep.subr.bf16.mxu0 0
    %406 = vmatpush1.bf16.msra.mxu0 %v385
    %407 = vmatprep.subr.bf16.mxu0 0
    %408 = vmatpush1.bf16.msra.mxu0 %v386
    %409 = vmatprep.subr.bf16.mxu0 0
    %410 = vmatpush1.bf16.msra.mxu0 %v387
    %411 = vmatprep.subr.bf16.mxu0 0
    %412 = vmatpush1.bf16.msra.mxu0 %v388
    %413 = vmatprep.subr.bf16.mxu0 0
    %414 = vmatpush1.bf16.msra.mxu0 0
    %415 = vmatprep.subr.bf16.mxu0 0
    %416 = vmatpush1.bf16.msra.mxu0 0
    %417 = vmatprep.subr.bf16.mxu0 0
    %418 = vmatpush1.bf16.msra.mxu0 0
    %419 = vmatprep.subr.bf16.mxu0 0
    %420 = vmatpush1.bf16.msra.mxu0 0
    %421 = vmatprep.subr.bf16.mxu0 0
    %422 = vmatpush1.bf16.msra.mxu0 0
    %423 = vmatprep.subr.bf16.mxu0 0
    %424 = vmatpush1.bf16.msra.mxu0 0
    %425 = vmatprep.subr.bf16.mxu0 0
    %426 = vmatpush1.bf16.msra.mxu0 0
    %427 = vmatprep.subr.bf16.mxu0 0
    %428 = vmatpush1.bf16.msra.mxu0 0
    %429 = vmatprep.mubr.bf16.mxu0 0
    %430 = vmatmul.mubr.bf16.gmra.mrb[0].mxu0 %v325
    %v431 = vpop.f32.mrb[0].mxu0
    %v432 = vadd.f32 %v347, %v431
    %v433 = vpop.f32.mrb[0].mxu0
    %v434 = vpop.f32.mrb[0].mxu0
    %v435 = vpop.f32.mrb[0].mxu0
    %436 = vdwg.mxu0
    %vm437 = vcmask 56320
    %438 = vst.msk [vmem:[#allocation2] sm:$0xff] %vm437, %v432
    // Predicated region
    $region30: #{_lambda_.5} parent=1 // pred_check
      _
    $region31: #{_lambda_.5} parent=1 // pred_check_branch
      %440 = sbr.rel (0) target = $region33
    $region32: #{_lambda_.5} parent=1 // pred_region
      %s442 = ssub.s32 128, 128
      %443 = vsyncadd [#allocation3], %s442
      %s445 = sshll.u32 [#allocation2], 4
      %s446 = int_to_ptr.vmem [resolvable:$true] %s445
      %448 = dma.vmem_to_hbm [thread:$0]  %s446, 128, %s7, [#allocation3]
    $region33: #{_lambda_.5} parent=1 // pred_fallthru
      _
    // Predicated region
    $region34: #{_lambda_.5} parent=1 // pred_check
      _
    $region35: #{_lambda_.5} parent=1 // pred_check_branch
      %450 = sbr.rel (0) target = $region37
    $region36: #{_lambda_.5} parent=1 // pred_region
      %451 = dma.done [#allocation3], 128
    $region37: #{_lambda_.5} parent=1 // pred_fallthru
      _
    %452 = vsyncpa [#allocation3], 1

</llo_original>
